<compile_context>
chip_gen: v5e
topology: v5e:2x2
jax: 0.10.0
libtpu: 0.0.40
codegen_flags: <defaults>
</compile_context>

<pallas_src>
import jax
import jax.numpy as jnp
from jax import lax
from jax.experimental import pallas as pl
from jax.experimental.pallas import tpu as pltpu


def embeddings_kernel(ids_ref, tok_hbm, pos_ref, gamma_ref, beta_ref, out_ref,
                      gbuf, sems):
    b = pl.program_id(0)
    j = pl.program_id(1)
    tq, hidden = out_ref.shape
    wave = gbuf.shape[1]
    n_waves = tq // wave
    seq = pl.num_programs(1) * tq
    base = b * seq + j * tq              # flattened row offset of this tile

    def issue_wave(wv, slot):
        # Issue all `wave` row-gather DMAs for wave `wv` into gbuf[slot].
        # Static Python loop -> fully unrolled, descriptor pushes back-to-back.
        # Every copy signals the SAME semaphore sems[slot].
        start = base + wv * wave
        for t in range(wave):
            row = ids_ref[start + t]      # token id from SMEM (scalar prefetch)
            pltpu.make_async_copy(
                tok_hbm.at[pl.ds(row, 1)],
                gbuf.at[slot, pl.ds(t, 1)],
                sems.at[slot],
            ).start()

    # Prime the pipeline with wave 0.
    issue_wave(0, 0)

    inv_h = jnp.float32(1.0 / hidden)
    g = gamma_ref[...]
    bt = beta_ref[...]

    @pl.loop(0, n_waves)
    def _(wv):
        slot = wv & 1
        # Single wait sized for the whole (wave, H) buffer: all `wave` row
        # copies signaled sems[slot], so one descriptor drains them all.
        pltpu.make_async_copy(
            tok_hbm.at[pl.ds(0, wave)], gbuf.at[slot], sems.at[slot]
        ).wait()

        # Prefetch the next wave into the other buffer while we compute.
        @pl.when(wv + 1 < n_waves)
        def _():
            issue_wave(wv + 1, 1 - slot)

        off = pl.multiple_of(wv * wave, wave)
        x = gbuf[slot].astype(jnp.float32) + \
            pos_ref[pl.ds(off, wave), :].astype(jnp.float32)

        # LayerNorm (eps = 1e-12): two independent reductions (sum, sum-of-sq)
        # so the cross-lane reductions can overlap.
        s1 = jnp.sum(x, axis=-1, keepdims=True)
        s2 = jnp.sum(x * x, axis=-1, keepdims=True)
        mean = s1 * inv_h
        var = jnp.maximum(s2 * inv_h - mean * mean, 0.0)
        y = (x - mean) * lax.rsqrt(var + 1e-12) * g + bt

        # nn.Dropout() is identity in eval mode.
        out_ref[pl.ds(off, wave), :] = y.astype(out_ref.dtype)


def _largest_tile(n, cap, step=8):
    """Largest multiple of `step` that divides `n` and is <= cap (>= step)."""
    best = 0
    t = step
    while t <= min(n, cap):
        if n % t == 0:
            best = t
        t += step
    return best


def embeddings_forward(input_ids, token_table, pos_table, gamma, beta,
                       *, out_dtype=jnp.float32):
    B, S = input_ids.shape
    V, H = token_table.shape
    P, _ = pos_table.shape
    assert P >= S
    assert S % 8 == 0, "choose S a multiple of 8 so row tiles are sublane-aligned"

    TQ = _largest_tile(S, 512)           # rows per grid step (tile of the sequence)
    assert TQ > 0 and S % TQ == 0
    W = _largest_tile(TQ, 32)            # rows per gather wave (32 max in flight)
    assert W > 0 and TQ % W == 0
    assert V >= W                        # wait-descriptor src uses rows [0, W)
    n_j = S // TQ
    n_tok = B * S

    ids_flat = input_ids.reshape(n_tok).astype(jnp.int32)
    gamma2 = gamma.reshape(1, H).astype(jnp.float32)
    beta2 = beta.reshape(1, H).astype(jnp.float32)

    grid_spec = pltpu.PrefetchScalarGridSpec(
        num_scalar_prefetch=1,               # ids_flat lands in SMEM
        grid=(B, n_j),
        in_specs=[
            # token table stays in HBM; gathered row-by-row with manual DMAs
            pl.BlockSpec(memory_space=pl.ANY),
            # position rows for this sequence tile
            pl.BlockSpec((TQ, H), lambda b, j, ids: (j, 0)),
            # LayerNorm affine params: constant block index -> loaded once
            pl.BlockSpec((1, H), lambda b, j, ids: (0, 0)),
            pl.BlockSpec((1, H), lambda b, j, ids: (0, 0)),
        ],
        out_specs=pl.BlockSpec((TQ, H), lambda b, j, ids: (b * n_j + j, 0)),
        scratch_shapes=[
            pltpu.VMEM((2, W, H), token_table.dtype),  # double-buffered gather waves
            pltpu.SemaphoreType.DMA((2,)),             # one shared sem per wave slot
        ],
    )

    out = pl.pallas_call(
        embeddings_kernel,
        out_shape=jax.ShapeDtypeStruct((n_tok, H), out_dtype),
        grid_spec=grid_spec,
        compiler_params=pltpu.CompilerParams(
            dimension_semantics=("parallel", "parallel")),   # blocks independent
    )(ids_flat, token_table, pos_table, gamma2, beta2)

    return out.reshape(B, S, H)


if __name__ == "__main__":
    # Small, BERT-shaped synthetic config (H multiple of 128 -> lane-dense tiles).
    B, S, H = 2, 16, 128        # batch, seq, hidden_size
    V, P = 512, 32              # vocab_size, max_position_embeddings

    key = jax.random.PRNGKey(0)
    k_tok, k_pos, k_ids = jax.random.split(key, 3)

    # nn.Embedding default init ~ N(0, 1); nn.LayerNorm init: gamma=1, beta=0.
    token_table = jax.random.normal(k_tok, (V, H), dtype=jnp.float32)
    pos_table = jax.random.normal(k_pos, (P, H), dtype=jnp.float32)
    gamma = jnp.ones((H,), jnp.float32)
    beta = jnp.zeros((H,), jnp.float32)

    input_ids = jax.random.randint(k_ids, (B, S), 0, V, dtype=jnp.int32)

    out = embeddings_forward(input_ids, token_table, pos_table, gamma, beta)
    out = jax.block_until_ready(out)

    # Pure-JAX reference (same semantics as the PyTorch forward, eval-mode dropout).
    tok = jnp.take(token_table, input_ids, axis=0)                  # (B, S, H)
    pos = pos_table[jnp.arange(S)][None, :, :]                      # (1, S, H)
    x = tok + pos
    mean = x.mean(-1, keepdims=True)
    var = ((x - mean) ** 2).mean(-1, keepdims=True)
    ref = (x - mean) / jnp.sqrt(var + 1e-12) * gamma + beta

    assert out.shape == (B, S, H)
    assert jnp.allclose(out, ref, atol=5e-5), "Pallas output mismatch vs reference"
    print("KERNEL_OK")
</pallas_src>

<mosaic_0001>
module attributes {stable_mosaic.version = 11 : i64} {
  func.func @embeddings_kernel(%arg0: i32, %arg1: i32, %arg2: memref<32xi32, #tpu.memory_space<smem>>, %arg3: memref<512x128xf32, #tpu.memory_space<any>>, %arg4: memref<16x128xf32, #tpu.memory_space<vmem>>, %arg5: memref<1x128xf32, #tpu.memory_space<vmem>>, %arg6: memref<1x128xf32, #tpu.memory_space<vmem>>, %arg7: memref<16x128xf32, #tpu.memory_space<vmem>>, %arg8: memref<2x16x128xf32, #tpu.memory_space<vmem>>, %arg9: memref<2x!tpu.dma_semaphore, #tpu.memory_space<semaphore_mem>>) attributes {dimension_semantics = [#tpu.dimension_semantics<parallel>, #tpu.dimension_semantics<parallel>], iteration_bounds = array<i64: 2, 1>, scalar_prefetch = 1 : i64, scratch_operands = 2 : i64, tpu.core_type = #tpu.core_type<tc>, window_params = [{}, {transform_indices = @transform_1, window_bounds = array<i64: 16, 128>}, {pipeline_mode = #tpu.pipeline_mode<synchronous>, transform_indices = @transform_2, window_bounds = array<i64: 1, 128>}, {pipeline_mode = #tpu.pipeline_mode<synchronous>, transform_indices = @transform_3, window_bounds = array<i64: 1, 128>}, {transform_indices = @transform_4, window_bounds = array<i64: 16, 128>}]} {
    %c16_i32 = arith.constant 16 : i32
    %0 = arith.muli %arg0, %c16_i32 : i32
    %c16_i32_0 = arith.constant 16 : i32
    %1 = arith.muli %arg1, %c16_i32_0 : i32
    %2 = arith.addi %0, %1 : i32
    %c0_i32 = arith.constant 0 : i32
    %3 = arith.addi %2, %c0_i32 : i32
    %c0_i32_1 = arith.constant 0 : i32
    %4 = arith.addi %3, %c0_i32_1 : i32
    %5 = arith.index_cast %4 : i32 to index
    %6 = memref.load %arg2[%5] : memref<32xi32, #tpu.memory_space<smem>>
    %c0_i32_2 = arith.constant 0 : i32
    %c0_i32_3 = arith.constant 0 : i32
    %c0_i32_4 = arith.constant 0 : i32
    %7 = tpu.memref_slice %arg3[%6, %c0_i32_4] : memref<512x128xf32, #tpu.memory_space<any>> -> memref<1x128xf32, #tpu.memory_space<any>>
    %c0_i32_5 = arith.constant 0 : i32
    %c0_i32_6 = arith.constant 0 : i32
    %8 = tpu.memref_slice %arg8[%c0_i32_2, %c0_i32_5, %c0_i32_6] : memref<2x16x128xf32, #tpu.memory_space<vmem>> -> memref<1x1x128xf32, #tpu.memory_space<vmem>>
    %9 = tpu.memref_squeeze %8 : memref<1x1x128xf32, #tpu.memory_space<vmem>> -> memref<1x128xf32, #tpu.memory_space<vmem>>
    %10 = tpu.memref_slice %arg9[%c0_i32_3] : memref<2x!tpu.dma_semaphore, #tpu.memory_space<semaphore_mem>> -> memref<1x!tpu.dma_semaphore, #tpu.memory_space<semaphore_mem>>
    %11 = tpu.memref_squeeze %10 : memref<1x!tpu.dma_semaphore, #tpu.memory_space<semaphore_mem>> -> memref<!tpu.dma_semaphore, #tpu.memory_space<semaphore_mem>>
    tpu.enqueue_dma source(%7 : memref<1x128xf32, #tpu.memory_space<any>>) target(%9 : memref<1x128xf32, #tpu.memory_space<vmem>>) target_semaphore(%11 : memref<!tpu.dma_semaphore, #tpu.memory_space<semaphore_mem>>)
    %c1_i32 = arith.constant 1 : i32
    %12 = arith.addi %3, %c1_i32 : i32
    %13 = arith.index_cast %12 : i32 to index
    %14 = memref.load %arg2[%13] : memref<32xi32, #tpu.memory_space<smem>>
    %c0_i32_7 = arith.constant 0 : i32
    %c0_i32_8 = arith.constant 0 : i32
    %c0_i32_9 = arith.constant 0 : i32
    %15 = tpu.memref_slice %arg3[%14, %c0_i32_9] : memref<512x128xf32, #tpu.memory_space<any>> -> memref<1x128xf32, #tpu.memory_space<any>>
    %c1_i32_10 = arith.constant 1 : i32
    %c0_i32_11 = arith.constant 0 : i32
    %16 = tpu.memref_slice %arg8[%c0_i32_7, %c1_i32_10, %c0_i32_11] : memref<2x16x128xf32, #tpu.memory_space<vmem>> -> memref<1x1x128xf32, #tpu.memory_space<vmem>>
    %17 = tpu.memref_squeeze %16 : memref<1x1x128xf32, #tpu.memory_space<vmem>> -> memref<1x128xf32, #tpu.memory_space<vmem>>
    %18 = tpu.memref_slice %arg9[%c0_i32_8] : memref<2x!tpu.dma_semaphore, #tpu.memory_space<semaphore_mem>> -> memref<1x!tpu.dma_semaphore, #tpu.memory_space<semaphore_mem>>
    %19 = tpu.memref_squeeze %18 : memref<1x!tpu.dma_semaphore, #tpu.memory_space<semaphore_mem>> -> memref<!tpu.dma_semaphore, #tpu.memory_space<semaphore_mem>>
    tpu.enqueue_dma source(%15 : memref<1x128xf32, #tpu.memory_space<any>>) target(%17 : memref<1x128xf32, #tpu.memory_space<vmem>>) target_semaphore(%19 : memref<!tpu.dma_semaphore, #tpu.memory_space<semaphore_mem>>)
    %c2_i32 = arith.constant 2 : i32
    %20 = arith.addi %3, %c2_i32 : i32
    %21 = arith.index_cast %20 : i32 to index
    %22 = memref.load %arg2[%21] : memref<32xi32, #tpu.memory_space<smem>>
    %c0_i32_12 = arith.constant 0 : i32
    %c0_i32_13 = arith.constant 0 : i32
    %c0_i32_14 = arith.constant 0 : i32
    %23 = tpu.memref_slice %arg3[%22, %c0_i32_14] : memref<512x128xf32, #tpu.memory_space<any>> -> memref<1x128xf32, #tpu.memory_space<any>>
    %c2_i32_15 = arith.constant 2 : i32
    %c0_i32_16 = arith.constant 0 : i32
    %24 = tpu.memref_slice %arg8[%c0_i32_12, %c2_i32_15, %c0_i32_16] : memref<2x16x128xf32, #tpu.memory_space<vmem>> -> memref<1x1x128xf32, #tpu.memory_space<vmem>>
    %25 = tpu.memref_squeeze %24 : memref<1x1x128xf32, #tpu.memory_space<vmem>> -> memref<1x128xf32, #tpu.memory_space<vmem>>
    %26 = tpu.memref_slice %arg9[%c0_i32_13] : memref<2x!tpu.dma_semaphore, #tpu.memory_space<semaphore_mem>> -> memref<1x!tpu.dma_semaphore, #tpu.memory_space<semaphore_mem>>
    %27 = tpu.memref_squeeze %26 : memref<1x!tpu.dma_semaphore, #tpu.memory_space<semaphore_mem>> -> memref<!tpu.dma_semaphore, #tpu.memory_space<semaphore_mem>>
    tpu.enqueue_dma source(%23 : memref<1x128xf32, #tpu.memory_space<any>>) target(%25 : memref<1x128xf32, #tpu.memory_space<vmem>>) target_semaphore(%27 : memref<!tpu.dma_semaphore, #tpu.memory_space<semaphore_mem>>)
    %c3_i32 = arith.constant 3 : i32
    %28 = arith.addi %3, %c3_i32 : i32
    %29 = arith.index_cast %28 : i32 to index
    %30 = memref.load %arg2[%29] : memref<32xi32, #tpu.memory_space<smem>>
    %c0_i32_17 = arith.constant 0 : i32
    %c0_i32_18 = arith.constant 0 : i32
    %c0_i32_19 = arith.constant 0 : i32
    %31 = tpu.memref_slice %arg3[%30, %c0_i32_19] : memref<512x128xf32, #tpu.memory_space<any>> -> memref<1x128xf32, #tpu.memory_space<any>>
    %c3_i32_20 = arith.constant 3 : i32
    %c0_i32_21 = arith.constant 0 : i32
    %32 = tpu.memref_slice %arg8[%c0_i32_17, %c3_i32_20, %c0_i32_21] : memref<2x16x128xf32, #tpu.memory_space<vmem>> -> memref<1x1x128xf32, #tpu.memory_space<vmem>>
    %33 = tpu.memref_squeeze %32 : memref<1x1x128xf32, #tpu.memory_space<vmem>> -> memref<1x128xf32, #tpu.memory_space<vmem>>
    %34 = tpu.memref_slice %arg9[%c0_i32_18] : memref<2x!tpu.dma_semaphore, #tpu.memory_space<semaphore_mem>> -> memref<1x!tpu.dma_semaphore, #tpu.memory_space<semaphore_mem>>
    %35 = tpu.memref_squeeze %34 : memref<1x!tpu.dma_semaphore, #tpu.memory_space<semaphore_mem>> -> memref<!tpu.dma_semaphore, #tpu.memory_space<semaphore_mem>>
    tpu.enqueue_dma source(%31 : memref<1x128xf32, #tpu.memory_space<any>>) target(%33 : memref<1x128xf32, #tpu.memory_space<vmem>>) target_semaphore(%35 : memref<!tpu.dma_semaphore, #tpu.memory_space<semaphore_mem>>)
    %c4_i32 = arith.constant 4 : i32
    %36 = arith.addi %3, %c4_i32 : i32
    %37 = arith.index_cast %36 : i32 to index
    %38 = memref.load %arg2[%37] : memref<32xi32, #tpu.memory_space<smem>>
    %c0_i32_22 = arith.constant 0 : i32
    %c0_i32_23 = arith.constant 0 : i32
    %c0_i32_24 = arith.constant 0 : i32
    %39 = tpu.memref_slice %arg3[%38, %c0_i32_24] : memref<512x128xf32, #tpu.memory_space<any>> -> memref<1x128xf32, #tpu.memory_space<any>>
    %c4_i32_25 = arith.constant 4 : i32
    %c0_i32_26 = arith.constant 0 : i32
    %40 = tpu.memref_slice %arg8[%c0_i32_22, %c4_i32_25, %c0_i32_26] : memref<2x16x128xf32, #tpu.memory_space<vmem>> -> memref<1x1x128xf32, #tpu.memory_space<vmem>>
    %41 = tpu.memref_squeeze %40 : memref<1x1x128xf32, #tpu.memory_space<vmem>> -> memref<1x128xf32, #tpu.memory_space<vmem>>
    %42 = tpu.memref_slice %arg9[%c0_i32_23] : memref<2x!tpu.dma_semaphore, #tpu.memory_space<semaphore_mem>> -> memref<1x!tpu.dma_semaphore, #tpu.memory_space<semaphore_mem>>
    %43 = tpu.memref_squeeze %42 : memref<1x!tpu.dma_semaphore, #tpu.memory_space<semaphore_mem>> -> memref<!tpu.dma_semaphore, #tpu.memory_space<semaphore_mem>>
    tpu.enqueue_dma source(%39 : memref<1x128xf32, #tpu.memory_space<any>>) target(%41 : memref<1x128xf32, #tpu.memory_space<vmem>>) target_semaphore(%43 : memref<!tpu.dma_semaphore, #tpu.memory_space<semaphore_mem>>)
    %c5_i32 = arith.constant 5 : i32
    %44 = arith.addi %3, %c5_i32 : i32
    %45 = arith.index_cast %44 : i32 to index
    %46 = memref.load %arg2[%45] : memref<32xi32, #tpu.memory_space<smem>>
    %c0_i32_27 = arith.constant 0 : i32
    %c0_i32_28 = arith.constant 0 : i32
    %c0_i32_29 = arith.constant 0 : i32
    %47 = tpu.memref_slice %arg3[%46, %c0_i32_29] : memref<512x128xf32, #tpu.memory_space<any>> -> memref<1x128xf32, #tpu.memory_space<any>>
    %c5_i32_30 = arith.constant 5 : i32
    %c0_i32_31 = arith.constant 0 : i32
    %48 = tpu.memref_slice %arg8[%c0_i32_27, %c5_i32_30, %c0_i32_31] : memref<2x16x128xf32, #tpu.memory_space<vmem>> -> memref<1x1x128xf32, #tpu.memory_space<vmem>>
    %49 = tpu.memref_squeeze %48 : memref<1x1x128xf32, #tpu.memory_space<vmem>> -> memref<1x128xf32, #tpu.memory_space<vmem>>
    %50 = tpu.memref_slice %arg9[%c0_i32_28] : memref<2x!tpu.dma_semaphore, #tpu.memory_space<semaphore_mem>> -> memref<1x!tpu.dma_semaphore, #tpu.memory_space<semaphore_mem>>
    %51 = tpu.memref_squeeze %50 : memref<1x!tpu.dma_semaphore, #tpu.memory_space<semaphore_mem>> -> memref<!tpu.dma_semaphore, #tpu.memory_space<semaphore_mem>>
    tpu.enqueue_dma source(%47 : memref<1x128xf32, #tpu.memory_space<any>>) target(%49 : memref<1x128xf32, #tpu.memory_space<vmem>>) target_semaphore(%51 : memref<!tpu.dma_semaphore, #tpu.memory_space<semaphore_mem>>)
    %c6_i32 = arith.constant 6 : i32
    %52 = arith.addi %3, %c6_i32 : i32
    %53 = arith.index_cast %52 : i32 to index
    %54 = memref.load %arg2[%53] : memref<32xi32, #tpu.memory_space<smem>>
    %c0_i32_32 = arith.constant 0 : i32
    %c0_i32_33 = arith.constant 0 : i32
    %c0_i32_34 = arith.constant 0 : i32
    %55 = tpu.memref_slice %arg3[%54, %c0_i32_34] : memref<512x128xf32, #tpu.memory_space<any>> -> memref<1x128xf32, #tpu.memory_space<any>>
    %c6_i32_35 = arith.constant 6 : i32
    %c0_i32_36 = arith.constant 0 : i32
    %56 = tpu.memref_slice %arg8[%c0_i32_32, %c6_i32_35, %c0_i32_36] : memref<2x16x128xf32, #tpu.memory_space<vmem>> -> memref<1x1x128xf32, #tpu.memory_space<vmem>>
    %57 = tpu.memref_squeeze %56 : memref<1x1x128xf32, #tpu.memory_space<vmem>> -> memref<1x128xf32, #tpu.memory_space<vmem>>
    %58 = tpu.memref_slice %arg9[%c0_i32_33] : memref<2x!tpu.dma_semaphore, #tpu.memory_space<semaphore_mem>> -> memref<1x!tpu.dma_semaphore, #tpu.memory_space<semaphore_mem>>
    %59 = tpu.memref_squeeze %58 : memref<1x!tpu.dma_semaphore, #tpu.memory_space<semaphore_mem>> -> memref<!tpu.dma_semaphore, #tpu.memory_space<semaphore_mem>>
    tpu.enqueue_dma source(%55 : memref<1x128xf32, #tpu.memory_space<any>>) target(%57 : memref<1x128xf32, #tpu.memory_space<vmem>>) target_semaphore(%59 : memref<!tpu.dma_semaphore, #tpu.memory_space<semaphore_mem>>)
    %c7_i32 = arith.constant 7 : i32
    %60 = arith.addi %3, %c7_i32 : i32
    %61 = arith.index_cast %60 : i32 to index
    %62 = memref.load %arg2[%61] : memref<32xi32, #tpu.memory_space<smem>>
    %c0_i32_37 = arith.constant 0 : i32
    %c0_i32_38 = arith.constant 0 : i32
    %c0_i32_39 = arith.constant 0 : i32
    %63 = tpu.memref_slice %arg3[%62, %c0_i32_39] : memref<512x128xf32, #tpu.memory_space<any>> -> memref<1x128xf32, #tpu.memory_space<any>>
    %c7_i32_40 = arith.constant 7 : i32
    %c0_i32_41 = arith.constant 0 : i32
    %64 = tpu.memref_slice %arg8[%c0_i32_37, %c7_i32_40, %c0_i32_41] : memref<2x16x128xf32, #tpu.memory_space<vmem>> -> memref<1x1x128xf32, #tpu.memory_space<vmem>>
    %65 = tpu.memref_squeeze %64 : memref<1x1x128xf32, #tpu.memory_space<vmem>> -> memref<1x128xf32, #tpu.memory_space<vmem>>
    %66 = tpu.memref_slice %arg9[%c0_i32_38] : memref<2x!tpu.dma_semaphore, #tpu.memory_space<semaphore_mem>> -> memref<1x!tpu.dma_semaphore, #tpu.memory_space<semaphore_mem>>
    %67 = tpu.memref_squeeze %66 : memref<1x!tpu.dma_semaphore, #tpu.memory_space<semaphore_mem>> -> memref<!tpu.dma_semaphore, #tpu.memory_space<semaphore_mem>>
    tpu.enqueue_dma source(%63 : memref<1x128xf32, #tpu.memory_space<any>>) target(%65 : memref<1x128xf32, #tpu.memory_space<vmem>>) target_semaphore(%67 : memref<!tpu.dma_semaphore, #tpu.memory_space<semaphore_mem>>)
    %c8_i32 = arith.constant 8 : i32
    %68 = arith.addi %3, %c8_i32 : i32
    %69 = arith.index_cast %68 : i32 to index
    %70 = memref.load %arg2[%69] : memref<32xi32, #tpu.memory_space<smem>>
    %c0_i32_42 = arith.constant 0 : i32
    %c0_i32_43 = arith.constant 0 : i32
    %c0_i32_44 = arith.constant 0 : i32
    %71 = tpu.memref_slice %arg3[%70, %c0_i32_44] : memref<512x128xf32, #tpu.memory_space<any>> -> memref<1x128xf32, #tpu.memory_space<any>>
    %c8_i32_45 = arith.constant 8 : i32
    %c0_i32_46 = arith.constant 0 : i32
    %72 = tpu.memref_slice %arg8[%c0_i32_42, %c8_i32_45, %c0_i32_46] : memref<2x16x128xf32, #tpu.memory_space<vmem>> -> memref<1x1x128xf32, #tpu.memory_space<vmem>>
    %73 = tpu.memref_squeeze %72 : memref<1x1x128xf32, #tpu.memory_space<vmem>> -> memref<1x128xf32, #tpu.memory_space<vmem>>
    %74 = tpu.memref_slice %arg9[%c0_i32_43] : memref<2x!tpu.dma_semaphore, #tpu.memory_space<semaphore_mem>> -> memref<1x!tpu.dma_semaphore, #tpu.memory_space<semaphore_mem>>
    %75 = tpu.memref_squeeze %74 : memref<1x!tpu.dma_semaphore, #tpu.memory_space<semaphore_mem>> -> memref<!tpu.dma_semaphore, #tpu.memory_space<semaphore_mem>>
    tpu.enqueue_dma source(%71 : memref<1x128xf32, #tpu.memory_space<any>>) target(%73 : memref<1x128xf32, #tpu.memory_space<vmem>>) target_semaphore(%75 : memref<!tpu.dma_semaphore, #tpu.memory_space<semaphore_mem>>)
    %c9_i32 = arith.constant 9 : i32
    %76 = arith.addi %3, %c9_i32 : i32
    %77 = arith.index_cast %76 : i32 to index
    %78 = memref.load %arg2[%77] : memref<32xi32, #tpu.memory_space<smem>>
    %c0_i32_47 = arith.constant 0 : i32
    %c0_i32_48 = arith.constant 0 : i32
    %c0_i32_49 = arith.constant 0 : i32
    %79 = tpu.memref_slice %arg3[%78, %c0_i32_49] : memref<512x128xf32, #tpu.memory_space<any>> -> memref<1x128xf32, #tpu.memory_space<any>>
    %c9_i32_50 = arith.constant 9 : i32
    %c0_i32_51 = arith.constant 0 : i32
    %80 = tpu.memref_slice %arg8[%c0_i32_47, %c9_i32_50, %c0_i32_51] : memref<2x16x128xf32, #tpu.memory_space<vmem>> -> memref<1x1x128xf32, #tpu.memory_space<vmem>>
    %81 = tpu.memref_squeeze %80 : memref<1x1x128xf32, #tpu.memory_space<vmem>> -> memref<1x128xf32, #tpu.memory_space<vmem>>
    %82 = tpu.memref_slice %arg9[%c0_i32_48] : memref<2x!tpu.dma_semaphore, #tpu.memory_space<semaphore_mem>> -> memref<1x!tpu.dma_semaphore, #tpu.memory_space<semaphore_mem>>
    %83 = tpu.memref_squeeze %82 : memref<1x!tpu.dma_semaphore, #tpu.memory_space<semaphore_mem>> -> memref<!tpu.dma_semaphore, #tpu.memory_space<semaphore_mem>>
    tpu.enqueue_dma source(%79 : memref<1x128xf32, #tpu.memory_space<any>>) target(%81 : memref<1x128xf32, #tpu.memory_space<vmem>>) target_semaphore(%83 : memref<!tpu.dma_semaphore, #tpu.memory_space<semaphore_mem>>)
    %c10_i32 = arith.constant 10 : i32
    %84 = arith.addi %3, %c10_i32 : i32
    %85 = arith.index_cast %84 : i32 to index
    %86 = memref.load %arg2[%85] : memref<32xi32, #tpu.memory_space<smem>>
    %c0_i32_52 = arith.constant 0 : i32
    %c0_i32_53 = arith.constant 0 : i32
    %c0_i32_54 = arith.constant 0 : i32
    %87 = tpu.memref_slice %arg3[%86, %c0_i32_54] : memref<512x128xf32, #tpu.memory_space<any>> -> memref<1x128xf32, #tpu.memory_space<any>>
    %c10_i32_55 = arith.constant 10 : i32
    %c0_i32_56 = arith.constant 0 : i32
    %88 = tpu.memref_slice %arg8[%c0_i32_52, %c10_i32_55, %c0_i32_56] : memref<2x16x128xf32, #tpu.memory_space<vmem>> -> memref<1x1x128xf32, #tpu.memory_space<vmem>>
    %89 = tpu.memref_squeeze %88 : memref<1x1x128xf32, #tpu.memory_space<vmem>> -> memref<1x128xf32, #tpu.memory_space<vmem>>
    %90 = tpu.memref_slice %arg9[%c0_i32_53] : memref<2x!tpu.dma_semaphore, #tpu.memory_space<semaphore_mem>> -> memref<1x!tpu.dma_semaphore, #tpu.memory_space<semaphore_mem>>
    %91 = tpu.memref_squeeze %90 : memref<1x!tpu.dma_semaphore, #tpu.memory_space<semaphore_mem>> -> memref<!tpu.dma_semaphore, #tpu.memory_space<semaphore_mem>>
    tpu.enqueue_dma source(%87 : memref<1x128xf32, #tpu.memory_space<any>>) target(%89 : memref<1x128xf32, #tpu.memory_space<vmem>>) target_semaphore(%91 : memref<!tpu.dma_semaphore, #tpu.memory_space<semaphore_mem>>)
    %c11_i32 = arith.constant 11 : i32
    %92 = arith.addi %3, %c11_i32 : i32
    %93 = arith.index_cast %92 : i32 to index
    %94 = memref.load %arg2[%93] : memref<32xi32, #tpu.memory_space<smem>>
    %c0_i32_57 = arith.constant 0 : i32
    %c0_i32_58 = arith.constant 0 : i32
    %c0_i32_59 = arith.constant 0 : i32
    %95 = tpu.memref_slice %arg3[%94, %c0_i32_59] : memref<512x128xf32, #tpu.memory_space<any>> -> memref<1x128xf32, #tpu.memory_space<any>>
    %c11_i32_60 = arith.constant 11 : i32
    %c0_i32_61 = arith.constant 0 : i32
    %96 = tpu.memref_slice %arg8[%c0_i32_57, %c11_i32_60, %c0_i32_61] : memref<2x16x128xf32, #tpu.memory_space<vmem>> -> memref<1x1x128xf32, #tpu.memory_space<vmem>>
    %97 = tpu.memref_squeeze %96 : memref<1x1x128xf32, #tpu.memory_space<vmem>> -> memref<1x128xf32, #tpu.memory_space<vmem>>
    %98 = tpu.memref_slice %arg9[%c0_i32_58] : memref<2x!tpu.dma_semaphore, #tpu.memory_space<semaphore_mem>> -> memref<1x!tpu.dma_semaphore, #tpu.memory_space<semaphore_mem>>
    %99 = tpu.memref_squeeze %98 : memref<1x!tpu.dma_semaphore, #tpu.memory_space<semaphore_mem>> -> memref<!tpu.dma_semaphore, #tpu.memory_space<semaphore_mem>>
    tpu.enqueue_dma source(%95 : memref<1x128xf32, #tpu.memory_space<any>>) target(%97 : memref<1x128xf32, #tpu.memory_space<vmem>>) target_semaphore(%99 : memref<!tpu.dma_semaphore, #tpu.memory_space<semaphore_mem>>)
    %c12_i32 = arith.constant 12 : i32
    %100 = arith.addi %3, %c12_i32 : i32
    %101 = arith.index_cast %100 : i32 to index
    %102 = memref.load %arg2[%101] : memref<32xi32, #tpu.memory_space<smem>>
    %c0_i32_62 = arith.constant 0 : i32
    %c0_i32_63 = arith.constant 0 : i32
    %c0_i32_64 = arith.constant 0 : i32
    %103 = tpu.memref_slice %arg3[%102, %c0_i32_64] : memref<512x128xf32, #tpu.memory_space<any>> -> memref<1x128xf32, #tpu.memory_space<any>>
    %c12_i32_65 = arith.constant 12 : i32
    %c0_i32_66 = arith.constant 0 : i32
    %104 = tpu.memref_slice %arg8[%c0_i32_62, %c12_i32_65, %c0_i32_66] : memref<2x16x128xf32, #tpu.memory_space<vmem>> -> memref<1x1x128xf32, #tpu.memory_space<vmem>>
    %105 = tpu.memref_squeeze %104 : memref<1x1x128xf32, #tpu.memory_space<vmem>> -> memref<1x128xf32, #tpu.memory_space<vmem>>
    %106 = tpu.memref_slice %arg9[%c0_i32_63] : memref<2x!tpu.dma_semaphore, #tpu.memory_space<semaphore_mem>> -> memref<1x!tpu.dma_semaphore, #tpu.memory_space<semaphore_mem>>
    %107 = tpu.memref_squeeze %106 : memref<1x!tpu.dma_semaphore, #tpu.memory_space<semaphore_mem>> -> memref<!tpu.dma_semaphore, #tpu.memory_space<semaphore_mem>>
    tpu.enqueue_dma source(%103 : memref<1x128xf32, #tpu.memory_space<any>>) target(%105 : memref<1x128xf32, #tpu.memory_space<vmem>>) target_semaphore(%107 : memref<!tpu.dma_semaphore, #tpu.memory_space<semaphore_mem>>)
    %c13_i32 = arith.constant 13 : i32
    %108 = arith.addi %3, %c13_i32 : i32
    %109 = arith.index_cast %108 : i32 to index
    %110 = memref.load %arg2[%109] : memref<32xi32, #tpu.memory_space<smem>>
    %c0_i32_67 = arith.constant 0 : i32
    %c0_i32_68 = arith.constant 0 : i32
    %c0_i32_69 = arith.constant 0 : i32
    %111 = tpu.memref_slice %arg3[%110, %c0_i32_69] : memref<512x128xf32, #tpu.memory_space<any>> -> memref<1x128xf32, #tpu.memory_space<any>>
    %c13_i32_70 = arith.constant 13 : i32
    %c0_i32_71 = arith.constant 0 : i32
    %112 = tpu.memref_slice %arg8[%c0_i32_67, %c13_i32_70, %c0_i32_71] : memref<2x16x128xf32, #tpu.memory_space<vmem>> -> memref<1x1x128xf32, #tpu.memory_space<vmem>>
    %113 = tpu.memref_squeeze %112 : memref<1x1x128xf32, #tpu.memory_space<vmem>> -> memref<1x128xf32, #tpu.memory_space<vmem>>
    %114 = tpu.memref_slice %arg9[%c0_i32_68] : memref<2x!tpu.dma_semaphore, #tpu.memory_space<semaphore_mem>> -> memref<1x!tpu.dma_semaphore, #tpu.memory_space<semaphore_mem>>
    %115 = tpu.memref_squeeze %114 : memref<1x!tpu.dma_semaphore, #tpu.memory_space<semaphore_mem>> -> memref<!tpu.dma_semaphore, #tpu.memory_space<semaphore_mem>>
    tpu.enqueue_dma source(%111 : memref<1x128xf32, #tpu.memory_space<any>>) target(%113 : memref<1x128xf32, #tpu.memory_space<vmem>>) target_semaphore(%115 : memref<!tpu.dma_semaphore, #tpu.memory_space<semaphore_mem>>)
    %c14_i32 = arith.constant 14 : i32
    %116 = arith.addi %3, %c14_i32 : i32
    %117 = arith.index_cast %116 : i32 to index
    %118 = memref.load %arg2[%117] : memref<32xi32, #tpu.memory_space<smem>>
    %c0_i32_72 = arith.constant 0 : i32
    %c0_i32_73 = arith.constant 0 : i32
    %c0_i32_74 = arith.constant 0 : i32
    %119 = tpu.memref_slice %arg3[%118, %c0_i32_74] : memref<512x128xf32, #tpu.memory_space<any>> -> memref<1x128xf32, #tpu.memory_space<any>>
    %c14_i32_75 = arith.constant 14 : i32
    %c0_i32_76 = arith.constant 0 : i32
    %120 = tpu.memref_slice %arg8[%c0_i32_72, %c14_i32_75, %c0_i32_76] : memref<2x16x128xf32, #tpu.memory_space<vmem>> -> memref<1x1x128xf32, #tpu.memory_space<vmem>>
    %121 = tpu.memref_squeeze %120 : memref<1x1x128xf32, #tpu.memory_space<vmem>> -> memref<1x128xf32, #tpu.memory_space<vmem>>
    %122 = tpu.memref_slice %arg9[%c0_i32_73] : memref<2x!tpu.dma_semaphore, #tpu.memory_space<semaphore_mem>> -> memref<1x!tpu.dma_semaphore, #tpu.memory_space<semaphore_mem>>
    %123 = tpu.memref_squeeze %122 : memref<1x!tpu.dma_semaphore, #tpu.memory_space<semaphore_mem>> -> memref<!tpu.dma_semaphore, #tpu.memory_space<semaphore_mem>>
    tpu.enqueue_dma source(%119 : memref<1x128xf32, #tpu.memory_space<any>>) target(%121 : memref<1x128xf32, #tpu.memory_space<vmem>>) target_semaphore(%123 : memref<!tpu.dma_semaphore, #tpu.memory_space<semaphore_mem>>)
    %c15_i32 = arith.constant 15 : i32
    %124 = arith.addi %3, %c15_i32 : i32
    %125 = arith.index_cast %124 : i32 to index
    %126 = memref.load %arg2[%125] : memref<32xi32, #tpu.memory_space<smem>>
    %c0_i32_77 = arith.constant 0 : i32
    %c0_i32_78 = arith.constant 0 : i32
    %c0_i32_79 = arith.constant 0 : i32
    %127 = tpu.memref_slice %arg3[%126, %c0_i32_79] : memref<512x128xf32, #tpu.memory_space<any>> -> memref<1x128xf32, #tpu.memory_space<any>>
    %c15_i32_80 = arith.constant 15 : i32
    %c0_i32_81 = arith.constant 0 : i32
    %128 = tpu.memref_slice %arg8[%c0_i32_77, %c15_i32_80, %c0_i32_81] : memref<2x16x128xf32, #tpu.memory_space<vmem>> -> memref<1x1x128xf32, #tpu.memory_space<vmem>>
    %129 = tpu.memref_squeeze %128 : memref<1x1x128xf32, #tpu.memory_space<vmem>> -> memref<1x128xf32, #tpu.memory_space<vmem>>
    %130 = tpu.memref_slice %arg9[%c0_i32_78] : memref<2x!tpu.dma_semaphore, #tpu.memory_space<semaphore_mem>> -> memref<1x!tpu.dma_semaphore, #tpu.memory_space<semaphore_mem>>
    %131 = tpu.memref_squeeze %130 : memref<1x!tpu.dma_semaphore, #tpu.memory_space<semaphore_mem>> -> memref<!tpu.dma_semaphore, #tpu.memory_space<semaphore_mem>>
    tpu.enqueue_dma source(%127 : memref<1x128xf32, #tpu.memory_space<any>>) target(%129 : memref<1x128xf32, #tpu.memory_space<vmem>>) target_semaphore(%131 : memref<!tpu.dma_semaphore, #tpu.memory_space<semaphore_mem>>)
    %c0 = arith.constant 0 : index
    %c0_82 = arith.constant 0 : index
    %132 = vector.load %arg5[%c0, %c0_82] : memref<1x128xf32, #tpu.memory_space<vmem>>, vector<1x128xf32>
    %c0_83 = arith.constant 0 : index
    %c0_84 = arith.constant 0 : index
    %133 = vector.load %arg6[%c0_83, %c0_84] : memref<1x128xf32, #tpu.memory_space<vmem>>, vector<1x128xf32>
    %cst = arith.constant 7.812500e-03 : f32
    %c0_i32_85 = arith.constant 0 : i32
    %c1_i32_86 = arith.constant 1 : i32
    %134 = arith.muli %c0_i32_85, %c1_i32_86 : i32
    %c0_i32_87 = arith.constant 0 : i32
    %135 = arith.addi %c0_i32_87, %134 : i32
    %c1_i32_88 = arith.constant 1 : i32
    %136 = arith.andi %135, %c1_i32_88 : i32
    %c0_i32_89 = arith.constant 0 : i32
    %c0_i32_90 = arith.constant 0 : i32
    %137 = tpu.memref_slice %arg3[%c0_i32_89, %c0_i32_90] : memref<512x128xf32, #tpu.memory_space<any>> -> memref<16x128xf32, #tpu.memory_space<any>>
    %c0_i32_91 = arith.constant 0 : i32
    %c0_i32_92 = arith.constant 0 : i32
    %138 = tpu.memref_slice %arg8[%136, %c0_i32_91, %c0_i32_92] : memref<2x16x128xf32, #tpu.memory_space<vmem>> -> memref<1x16x128xf32, #tpu.memory_space<vmem>>
    %139 = tpu.memref_squeeze %138 : memref<1x16x128xf32, #tpu.memory_space<vmem>> -> memref<16x128xf32, #tpu.memory_space<vmem>>
    %140 = tpu.memref_slice %arg9[%136] : memref<2x!tpu.dma_semaphore, #tpu.memory_space<semaphore_mem>> -> memref<1x!tpu.dma_semaphore, #tpu.memory_space<semaphore_mem>>
    %141 = tpu.memref_squeeze %140 : memref<1x!tpu.dma_semaphore, #tpu.memory_space<semaphore_mem>> -> memref<!tpu.dma_semaphore, #tpu.memory_space<semaphore_mem>>
    tpu.wait_dma2 semaphore(%141 : memref<!tpu.dma_semaphore, #tpu.memory_space<semaphore_mem>>) src(%137 : memref<16x128xf32, #tpu.memory_space<any>>) dst(%139 : memref<16x128xf32, #tpu.memory_space<vmem>>)
    %c1_i32_93 = arith.constant 1 : i32
    %142 = arith.addi %135, %c1_i32_93 : i32
    %c1_i32_94 = arith.constant 1 : i32
    %143 = arith.cmpi slt, %142, %c1_i32_94 : i32
    %144 = arith.extui %143 : i1 to i32
    %c0_i32_95 = arith.constant 0 : i32
    %145 = arith.cmpi ne, %144, %c0_i32_95 : i32
    scf.if %145 {
      %c1_i32_106 = arith.constant 1 : i32
      %180 = arith.addi %135, %c1_i32_106 : i32
      %c1_i32_107 = arith.constant 1 : i32
      %181 = arith.subi %c1_i32_107, %136 : i32
      %c16_i32_108 = arith.constant 16 : i32
      %182 = arith.muli %180, %c16_i32_108 : i32
      %183 = arith.addi %2, %182 : i32
      %c0_i32_109 = arith.constant 0 : i32
      %184 = arith.addi %183, %c0_i32_109 : i32
      %185 = arith.index_cast %184 : i32 to index
      %186 = memref.load %arg2[%185] : memref<32xi32, #tpu.memory_space<smem>>
      %c0_i32_110 = arith.constant 0 : i32
      %187 = tpu.memref_slice %arg3[%186, %c0_i32_110] : memref<512x128xf32, #tpu.memory_space<any>> -> memref<1x128xf32, #tpu.memory_space<any>>
      %c0_i32_111 = arith.constant 0 : i32
      %c0_i32_112 = arith.constant 0 : i32
      %188 = tpu.memref_slice %arg8[%181, %c0_i32_111, %c0_i32_112] : memref<2x16x128xf32, #tpu.memory_space<vmem>> -> memref<1x1x128xf32, #tpu.memory_space<vmem>>
      %189 = tpu.memref_squeeze %188 : memref<1x1x128xf32, #tpu.memory_space<vmem>> -> memref<1x128xf32, #tpu.memory_space<vmem>>
      %190 = tpu.memref_slice %arg9[%181] : memref<2x!tpu.dma_semaphore, #tpu.memory_space<semaphore_mem>> -> memref<1x!tpu.dma_semaphore, #tpu.memory_space<semaphore_mem>>
      %191 = tpu.memref_squeeze %190 : memref<1x!tpu.dma_semaphore, #tpu.memory_space<semaphore_mem>> -> memref<!tpu.dma_semaphore, #tpu.memory_space<semaphore_mem>>
      tpu.enqueue_dma source(%187 : memref<1x128xf32, #tpu.memory_space<any>>) target(%189 : memref<1x128xf32, #tpu.memory_space<vmem>>) target_semaphore(%191 : memref<!tpu.dma_semaphore, #tpu.memory_space<semaphore_mem>>)
      %c1_i32_113 = arith.constant 1 : i32
      %192 = arith.addi %183, %c1_i32_113 : i32
      %193 = arith.index_cast %192 : i32 to index
      %194 = memref.load %arg2[%193] : memref<32xi32, #tpu.memory_space<smem>>
      %c0_i32_114 = arith.constant 0 : i32
      %195 = tpu.memref_slice %arg3[%194, %c0_i32_114] : memref<512x128xf32, #tpu.memory_space<any>> -> memref<1x128xf32, #tpu.memory_space<any>>
      %c1_i32_115 = arith.constant 1 : i32
      %c0_i32_116 = arith.constant 0 : i32
      %196 = tpu.memref_slice %arg8[%181, %c1_i32_115, %c0_i32_116] : memref<2x16x128xf32, #tpu.memory_space<vmem>> -> memref<1x1x128xf32, #tpu.memory_space<vmem>>
      %197 = tpu.memref_squeeze %196 : memref<1x1x128xf32, #tpu.memory_space<vmem>> -> memref<1x128xf32, #tpu.memory_space<vmem>>
      %198 = tpu.memref_slice %arg9[%181] : memref<2x!tpu.dma_semaphore, #tpu.memory_space<semaphore_mem>> -> memref<1x!tpu.dma_semaphore, #tpu.memory_space<semaphore_mem>>
      %199 = tpu.memref_squeeze %198 : memref<1x!tpu.dma_semaphore, #tpu.memory_space<semaphore_mem>> -> memref<!tpu.dma_semaphore, #tpu.memory_space<semaphore_mem>>
      tpu.enqueue_dma source(%195 : memref<1x128xf32, #tpu.memory_space<any>>) target(%197 : memref<1x128xf32, #tpu.memory_space<vmem>>) target_semaphore(%199 : memref<!tpu.dma_semaphore, #tpu.memory_space<semaphore_mem>>)
      %c2_i32_117 = arith.constant 2 : i32
      %200 = arith.addi %183, %c2_i32_117 : i32
      %201 = arith.index_cast %200 : i32 to index
      %202 = memref.load %arg2[%201] : memref<32xi32, #tpu.memory_space<smem>>
      %c0_i32_118 = arith.constant 0 : i32
      %203 = tpu.memref_slice %arg3[%202, %c0_i32_118] : memref<512x128xf32, #tpu.memory_space<any>> -> memref<1x128xf32, #tpu.memory_space<any>>
      %c2_i32_119 = arith.constant 2 : i32
      %c0_i32_120 = arith.constant 0 : i32
      %204 = tpu.memref_slice %arg8[%181, %c2_i32_119, %c0_i32_120] : memref<2x16x128xf32, #tpu.memory_space<vmem>> -> memref<1x1x128xf32, #tpu.memory_space<vmem>>
      %205 = tpu.memref_squeeze %204 : memref<1x1x128xf32, #tpu.memory_space<vmem>> -> memref<1x128xf32, #tpu.memory_space<vmem>>
      %206 = tpu.memref_slice %arg9[%181] : memref<2x!tpu.dma_semaphore, #tpu.memory_space<semaphore_mem>> -> memref<1x!tpu.dma_semaphore, #tpu.memory_space<semaphore_mem>>
      %207 = tpu.memref_squeeze %206 : memref<1x!tpu.dma_semaphore, #tpu.memory_space<semaphore_mem>> -> memref<!tpu.dma_semaphore, #tpu.memory_space<semaphore_mem>>
      tpu.enqueue_dma source(%203 : memref<1x128xf32, #tpu.memory_space<any>>) target(%205 : memref<1x128xf32, #tpu.memory_space<vmem>>) target_semaphore(%207 : memref<!tpu.dma_semaphore, #tpu.memory_space<semaphore_mem>>)
      %c3_i32_121 = arith.constant 3 : i32
      %208 = arith.addi %183, %c3_i32_121 : i32
      %209 = arith.index_cast %208 : i32 to index
      %210 = memref.load %arg2[%209] : memref<32xi32, #tpu.memory_space<smem>>
      %c0_i32_122 = arith.constant 0 : i32
      %211 = tpu.memref_slice %arg3[%210, %c0_i32_122] : memref<512x128xf32, #tpu.memory_space<any>> -> memref<1x128xf32, #tpu.memory_space<any>>
      %c3_i32_123 = arith.constant 3 : i32
      %c0_i32_124 = arith.constant 0 : i32
      %212 = tpu.memref_slice %arg8[%181, %c3_i32_123, %c0_i32_124] : memref<2x16x128xf32, #tpu.memory_space<vmem>> -> memref<1x1x128xf32, #tpu.memory_space<vmem>>
      %213 = tpu.memref_squeeze %212 : memref<1x1x128xf32, #tpu.memory_space<vmem>> -> memref<1x128xf32, #tpu.memory_space<vmem>>
      %214 = tpu.memref_slice %arg9[%181] : memref<2x!tpu.dma_semaphore, #tpu.memory_space<semaphore_mem>> -> memref<1x!tpu.dma_semaphore, #tpu.memory_space<semaphore_mem>>
      %215 = tpu.memref_squeeze %214 : memref<1x!tpu.dma_semaphore, #tpu.memory_space<semaphore_mem>> -> memref<!tpu.dma_semaphore, #tpu.memory_space<semaphore_mem>>
      tpu.enqueue_dma source(%211 : memref<1x128xf32, #tpu.memory_space<any>>) target(%213 : memref<1x128xf32, #tpu.memory_space<vmem>>) target_semaphore(%215 : memref<!tpu.dma_semaphore, #tpu.memory_space<semaphore_mem>>)
      %c4_i32_125 = arith.constant 4 : i32
      %216 = arith.addi %183, %c4_i32_125 : i32
      %217 = arith.index_cast %216 : i32 to index
      %218 = memref.load %arg2[%217] : memref<32xi32, #tpu.memory_space<smem>>
      %c0_i32_126 = arith.constant 0 : i32
      %219 = tpu.memref_slice %arg3[%218, %c0_i32_126] : memref<512x128xf32, #tpu.memory_space<any>> -> memref<1x128xf32, #tpu.memory_space<any>>
      %c4_i32_127 = arith.constant 4 : i32
      %c0_i32_128 = arith.constant 0 : i32
      %220 = tpu.memref_slice %arg8[%181, %c4_i32_127, %c0_i32_128] : memref<2x16x128xf32, #tpu.memory_space<vmem>> -> memref<1x1x128xf32, #tpu.memory_space<vmem>>
      %221 = tpu.memref_squeeze %220 : memref<1x1x128xf32, #tpu.memory_space<vmem>> -> memref<1x128xf32, #tpu.memory_space<vmem>>
      %222 = tpu.memref_slice %arg9[%181] : memref<2x!tpu.dma_semaphore, #tpu.memory_space<semaphore_mem>> -> memref<1x!tpu.dma_semaphore, #tpu.memory_space<semaphore_mem>>
      %223 = tpu.memref_squeeze %222 : memref<1x!tpu.dma_semaphore, #tpu.memory_space<semaphore_mem>> -> memref<!tpu.dma_semaphore, #tpu.memory_space<semaphore_mem>>
      tpu.enqueue_dma source(%219 : memref<1x128xf32, #tpu.memory_space<any>>) target(%221 : memref<1x128xf32, #tpu.memory_space<vmem>>) target_semaphore(%223 : memref<!tpu.dma_semaphore, #tpu.memory_space<semaphore_mem>>)
      %c5_i32_129 = arith.constant 5 : i32
      %224 = arith.addi %183, %c5_i32_129 : i32
      %225 = arith.index_cast %224 : i32 to index
      %226 = memref.load %arg2[%225] : memref<32xi32, #tpu.memory_space<smem>>
      %c0_i32_130 = arith.constant 0 : i32
      %227 = tpu.memref_slice %arg3[%226, %c0_i32_130] : memref<512x128xf32, #tpu.memory_space<any>> -> memref<1x128xf32, #tpu.memory_space<any>>
      %c5_i32_131 = arith.constant 5 : i32
      %c0_i32_132 = arith.constant 0 : i32
      %228 = tpu.memref_slice %arg8[%181, %c5_i32_131, %c0_i32_132] : memref<2x16x128xf32, #tpu.memory_space<vmem>> -> memref<1x1x128xf32, #tpu.memory_space<vmem>>
      %229 = tpu.memref_squeeze %228 : memref<1x1x128xf32, #tpu.memory_space<vmem>> -> memref<1x128xf32, #tpu.memory_space<vmem>>
      %230 = tpu.memref_slice %arg9[%181] : memref<2x!tpu.dma_semaphore, #tpu.memory_space<semaphore_mem>> -> memref<1x!tpu.dma_semaphore, #tpu.memory_space<semaphore_mem>>
      %231 = tpu.memref_squeeze %230 : memref<1x!tpu.dma_semaphore, #tpu.memory_space<semaphore_mem>> -> memref<!tpu.dma_semaphore, #tpu.memory_space<semaphore_mem>>
      tpu.enqueue_dma source(%227 : memref<1x128xf32, #tpu.memory_space<any>>) target(%229 : memref<1x128xf32, #tpu.memory_space<vmem>>) target_semaphore(%231 : memref<!tpu.dma_semaphore, #tpu.memory_space<semaphore_mem>>)
      %c6_i32_133 = arith.constant 6 : i32
      %232 = arith.addi %183, %c6_i32_133 : i32
      %233 = arith.index_cast %232 : i32 to index
      %234 = memref.load %arg2[%233] : memref<32xi32, #tpu.memory_space<smem>>
      %c0_i32_134 = arith.constant 0 : i32
      %235 = tpu.memref_slice %arg3[%234, %c0_i32_134] : memref<512x128xf32, #tpu.memory_space<any>> -> memref<1x128xf32, #tpu.memory_space<any>>
      %c6_i32_135 = arith.constant 6 : i32
      %c0_i32_136 = arith.constant 0 : i32
      %236 = tpu.memref_slice %arg8[%181, %c6_i32_135, %c0_i32_136] : memref<2x16x128xf32, #tpu.memory_space<vmem>> -> memref<1x1x128xf32, #tpu.memory_space<vmem>>
      %237 = tpu.memref_squeeze %236 : memref<1x1x128xf32, #tpu.memory_space<vmem>> -> memref<1x128xf32, #tpu.memory_space<vmem>>
      %238 = tpu.memref_slice %arg9[%181] : memref<2x!tpu.dma_semaphore, #tpu.memory_space<semaphore_mem>> -> memref<1x!tpu.dma_semaphore, #tpu.memory_space<semaphore_mem>>
      %239 = tpu.memref_squeeze %238 : memref<1x!tpu.dma_semaphore, #tpu.memory_space<semaphore_mem>> -> memref<!tpu.dma_semaphore, #tpu.memory_space<semaphore_mem>>
      tpu.enqueue_dma source(%235 : memref<1x128xf32, #tpu.memory_space<any>>) target(%237 : memref<1x128xf32, #tpu.memory_space<vmem>>) target_semaphore(%239 : memref<!tpu.dma_semaphore, #tpu.memory_space<semaphore_mem>>)
      %c7_i32_137 = arith.constant 7 : i32
      %240 = arith.addi %183, %c7_i32_137 : i32
      %241 = arith.index_cast %240 : i32 to index
      %242 = memref.load %arg2[%241] : memref<32xi32, #tpu.memory_space<smem>>
      %c0_i32_138 = arith.constant 0 : i32
      %243 = tpu.memref_slice %arg3[%242, %c0_i32_138] : memref<512x128xf32, #tpu.memory_space<any>> -> memref<1x128xf32, #tpu.memory_space<any>>
      %c7_i32_139 = arith.constant 7 : i32
      %c0_i32_140 = arith.constant 0 : i32
      %244 = tpu.memref_slice %arg8[%181, %c7_i32_139, %c0_i32_140] : memref<2x16x128xf32, #tpu.memory_space<vmem>> -> memref<1x1x128xf32, #tpu.memory_space<vmem>>
      %245 = tpu.memref_squeeze %244 : memref<1x1x128xf32, #tpu.memory_space<vmem>> -> memref<1x128xf32, #tpu.memory_space<vmem>>
      %246 = tpu.memref_slice %arg9[%181] : memref<2x!tpu.dma_semaphore, #tpu.memory_space<semaphore_mem>> -> memref<1x!tpu.dma_semaphore, #tpu.memory_space<semaphore_mem>>
      %247 = tpu.memref_squeeze %246 : memref<1x!tpu.dma_semaphore, #tpu.memory_space<semaphore_mem>> -> memref<!tpu.dma_semaphore, #tpu.memory_space<semaphore_mem>>
      tpu.enqueue_dma source(%243 : memref<1x128xf32, #tpu.memory_space<any>>) target(%245 : memref<1x128xf32, #tpu.memory_space<vmem>>) target_semaphore(%247 : memref<!tpu.dma_semaphore, #tpu.memory_space<semaphore_mem>>)
      %c8_i32_141 = arith.constant 8 : i32
      %248 = arith.addi %183, %c8_i32_141 : i32
      %249 = arith.index_cast %248 : i32 to index
      %250 = memref.load %arg2[%249] : memref<32xi32, #tpu.memory_space<smem>>
      %c0_i32_142 = arith.constant 0 : i32
      %251 = tpu.memref_slice %arg3[%250, %c0_i32_142] : memref<512x128xf32, #tpu.memory_space<any>> -> memref<1x128xf32, #tpu.memory_space<any>>
      %c8_i32_143 = arith.constant 8 : i32
      %c0_i32_144 = arith.constant 0 : i32
      %252 = tpu.memref_slice %arg8[%181, %c8_i32_143, %c0_i32_144] : memref<2x16x128xf32, #tpu.memory_space<vmem>> -> memref<1x1x128xf32, #tpu.memory_space<vmem>>
      %253 = tpu.memref_squeeze %252 : memref<1x1x128xf32, #tpu.memory_space<vmem>> -> memref<1x128xf32, #tpu.memory_space<vmem>>
      %254 = tpu.memref_slice %arg9[%181] : memref<2x!tpu.dma_semaphore, #tpu.memory_space<semaphore_mem>> -> memref<1x!tpu.dma_semaphore, #tpu.memory_space<semaphore_mem>>
      %255 = tpu.memref_squeeze %254 : memref<1x!tpu.dma_semaphore, #tpu.memory_space<semaphore_mem>> -> memref<!tpu.dma_semaphore, #tpu.memory_space<semaphore_mem>>
      tpu.enqueue_dma source(%251 : memref<1x128xf32, #tpu.memory_space<any>>) target(%253 : memref<1x128xf32, #tpu.memory_space<vmem>>) target_semaphore(%255 : memref<!tpu.dma_semaphore, #tpu.memory_space<semaphore_mem>>)
      %c9_i32_145 = arith.constant 9 : i32
      %256 = arith.addi %183, %c9_i32_145 : i32
      %257 = arith.index_cast %256 : i32 to index
      %258 = memref.load %arg2[%257] : memref<32xi32, #tpu.memory_space<smem>>
      %c0_i32_146 = arith.constant 0 : i32
      %259 = tpu.memref_slice %arg3[%258, %c0_i32_146] : memref<512x128xf32, #tpu.memory_space<any>> -> memref<1x128xf32, #tpu.memory_space<any>>
      %c9_i32_147 = arith.constant 9 : i32
      %c0_i32_148 = arith.constant 0 : i32
      %260 = tpu.memref_slice %arg8[%181, %c9_i32_147, %c0_i32_148] : memref<2x16x128xf32, #tpu.memory_space<vmem>> -> memref<1x1x128xf32, #tpu.memory_space<vmem>>
      %261 = tpu.memref_squeeze %260 : memref<1x1x128xf32, #tpu.memory_space<vmem>> -> memref<1x128xf32, #tpu.memory_space<vmem>>
      %262 = tpu.memref_slice %arg9[%181] : memref<2x!tpu.dma_semaphore, #tpu.memory_space<semaphore_mem>> -> memref<1x!tpu.dma_semaphore, #tpu.memory_space<semaphore_mem>>
      %263 = tpu.memref_squeeze %262 : memref<1x!tpu.dma_semaphore, #tpu.memory_space<semaphore_mem>> -> memref<!tpu.dma_semaphore, #tpu.memory_space<semaphore_mem>>
      tpu.enqueue_dma source(%259 : memref<1x128xf32, #tpu.memory_space<any>>) target(%261 : memref<1x128xf32, #tpu.memory_space<vmem>>) target_semaphore(%263 : memref<!tpu.dma_semaphore, #tpu.memory_space<semaphore_mem>>)
      %c10_i32_149 = arith.constant 10 : i32
      %264 = arith.addi %183, %c10_i32_149 : i32
      %265 = arith.index_cast %264 : i32 to index
      %266 = memref.load %arg2[%265] : memref<32xi32, #tpu.memory_space<smem>>
      %c0_i32_150 = arith.constant 0 : i32
      %267 = tpu.memref_slice %arg3[%266, %c0_i32_150] : memref<512x128xf32, #tpu.memory_space<any>> -> memref<1x128xf32, #tpu.memory_space<any>>
      %c10_i32_151 = arith.constant 10 : i32
      %c0_i32_152 = arith.constant 0 : i32
      %268 = tpu.memref_slice %arg8[%181, %c10_i32_151, %c0_i32_152] : memref<2x16x128xf32, #tpu.memory_space<vmem>> -> memref<1x1x128xf32, #tpu.memory_space<vmem>>
      %269 = tpu.memref_squeeze %268 : memref<1x1x128xf32, #tpu.memory_space<vmem>> -> memref<1x128xf32, #tpu.memory_space<vmem>>
      %270 = tpu.memref_slice %arg9[%181] : memref<2x!tpu.dma_semaphore, #tpu.memory_space<semaphore_mem>> -> memref<1x!tpu.dma_semaphore, #tpu.memory_space<semaphore_mem>>
      %271 = tpu.memref_squeeze %270 : memref<1x!tpu.dma_semaphore, #tpu.memory_space<semaphore_mem>> -> memref<!tpu.dma_semaphore, #tpu.memory_space<semaphore_mem>>
      tpu.enqueue_dma source(%267 : memref<1x128xf32, #tpu.memory_space<any>>) target(%269 : memref<1x128xf32, #tpu.memory_space<vmem>>) target_semaphore(%271 : memref<!tpu.dma_semaphore, #tpu.memory_space<semaphore_mem>>)
      %c11_i32_153 = arith.constant 11 : i32
      %272 = arith.addi %183, %c11_i32_153 : i32
      %273 = arith.index_cast %272 : i32 to index
      %274 = memref.load %arg2[%273] : memref<32xi32, #tpu.memory_space<smem>>
      %c0_i32_154 = arith.constant 0 : i32
      %275 = tpu.memref_slice %arg3[%274, %c0_i32_154] : memref<512x128xf32, #tpu.memory_space<any>> -> memref<1x128xf32, #tpu.memory_space<any>>
      %c11_i32_155 = arith.constant 11 : i32
      %c0_i32_156 = arith.constant 0 : i32
      %276 = tpu.memref_slice %arg8[%181, %c11_i32_155, %c0_i32_156] : memref<2x16x128xf32, #tpu.memory_space<vmem>> -> memref<1x1x128xf32, #tpu.memory_space<vmem>>
      %277 = tpu.memref_squeeze %276 : memref<1x1x128xf32, #tpu.memory_space<vmem>> -> memref<1x128xf32, #tpu.memory_space<vmem>>
      %278 = tpu.memref_slice %arg9[%181] : memref<2x!tpu.dma_semaphore, #tpu.memory_space<semaphore_mem>> -> memref<1x!tpu.dma_semaphore, #tpu.memory_space<semaphore_mem>>
      %279 = tpu.memref_squeeze %278 : memref<1x!tpu.dma_semaphore, #tpu.memory_space<semaphore_mem>> -> memref<!tpu.dma_semaphore, #tpu.memory_space<semaphore_mem>>
      tpu.enqueue_dma source(%275 : memref<1x128xf32, #tpu.memory_space<any>>) target(%277 : memref<1x128xf32, #tpu.memory_space<vmem>>) target_semaphore(%279 : memref<!tpu.dma_semaphore, #tpu.memory_space<semaphore_mem>>)
      %c12_i32_157 = arith.constant 12 : i32
      %280 = arith.addi %183, %c12_i32_157 : i32
      %281 = arith.index_cast %280 : i32 to index
      %282 = memref.load %arg2[%281] : memref<32xi32, #tpu.memory_space<smem>>
      %c0_i32_158 = arith.constant 0 : i32
      %283 = tpu.memref_slice %arg3[%282, %c0_i32_158] : memref<512x128xf32, #tpu.memory_space<any>> -> memref<1x128xf32, #tpu.memory_space<any>>
      %c12_i32_159 = arith.constant 12 : i32
      %c0_i32_160 = arith.constant 0 : i32
      %284 = tpu.memref_slice %arg8[%181, %c12_i32_159, %c0_i32_160] : memref<2x16x128xf32, #tpu.memory_space<vmem>> -> memref<1x1x128xf32, #tpu.memory_space<vmem>>
      %285 = tpu.memref_squeeze %284 : memref<1x1x128xf32, #tpu.memory_space<vmem>> -> memref<1x128xf32, #tpu.memory_space<vmem>>
      %286 = tpu.memref_slice %arg9[%181] : memref<2x!tpu.dma_semaphore, #tpu.memory_space<semaphore_mem>> -> memref<1x!tpu.dma_semaphore, #tpu.memory_space<semaphore_mem>>
      %287 = tpu.memref_squeeze %286 : memref<1x!tpu.dma_semaphore, #tpu.memory_space<semaphore_mem>> -> memref<!tpu.dma_semaphore, #tpu.memory_space<semaphore_mem>>
      tpu.enqueue_dma source(%283 : memref<1x128xf32, #tpu.memory_space<any>>) target(%285 : memref<1x128xf32, #tpu.memory_space<vmem>>) target_semaphore(%287 : memref<!tpu.dma_semaphore, #tpu.memory_space<semaphore_mem>>)
      %c13_i32_161 = arith.constant 13 : i32
      %288 = arith.addi %183, %c13_i32_161 : i32
      %289 = arith.index_cast %288 : i32 to index
      %290 = memref.load %arg2[%289] : memref<32xi32, #tpu.memory_space<smem>>
      %c0_i32_162 = arith.constant 0 : i32
      %291 = tpu.memref_slice %arg3[%290, %c0_i32_162] : memref<512x128xf32, #tpu.memory_space<any>> -> memref<1x128xf32, #tpu.memory_space<any>>
      %c13_i32_163 = arith.constant 13 : i32
      %c0_i32_164 = arith.constant 0 : i32
      %292 = tpu.memref_slice %arg8[%181, %c13_i32_163, %c0_i32_164] : memref<2x16x128xf32, #tpu.memory_space<vmem>> -> memref<1x1x128xf32, #tpu.memory_space<vmem>>
      %293 = tpu.memref_squeeze %292 : memref<1x1x128xf32, #tpu.memory_space<vmem>> -> memref<1x128xf32, #tpu.memory_space<vmem>>
      %294 = tpu.memref_slice %arg9[%181] : memref<2x!tpu.dma_semaphore, #tpu.memory_space<semaphore_mem>> -> memref<1x!tpu.dma_semaphore, #tpu.memory_space<semaphore_mem>>
      %295 = tpu.memref_squeeze %294 : memref<1x!tpu.dma_semaphore, #tpu.memory_space<semaphore_mem>> -> memref<!tpu.dma_semaphore, #tpu.memory_space<semaphore_mem>>
      tpu.enqueue_dma source(%291 : memref<1x128xf32, #tpu.memory_space<any>>) target(%293 : memref<1x128xf32, #tpu.memory_space<vmem>>) target_semaphore(%295 : memref<!tpu.dma_semaphore, #tpu.memory_space<semaphore_mem>>)
      %c14_i32_165 = arith.constant 14 : i32
      %296 = arith.addi %183, %c14_i32_165 : i32
      %297 = arith.index_cast %296 : i32 to index
      %298 = memref.load %arg2[%297] : memref<32xi32, #tpu.memory_space<smem>>
      %c0_i32_166 = arith.constant 0 : i32
      %299 = tpu.memref_slice %arg3[%298, %c0_i32_166] : memref<512x128xf32, #tpu.memory_space<any>> -> memref<1x128xf32, #tpu.memory_space<any>>
      %c14_i32_167 = arith.constant 14 : i32
      %c0_i32_168 = arith.constant 0 : i32
      %300 = tpu.memref_slice %arg8[%181, %c14_i32_167, %c0_i32_168] : memref<2x16x128xf32, #tpu.memory_space<vmem>> -> memref<1x1x128xf32, #tpu.memory_space<vmem>>
      %301 = tpu.memref_squeeze %300 : memref<1x1x128xf32, #tpu.memory_space<vmem>> -> memref<1x128xf32, #tpu.memory_space<vmem>>
      %302 = tpu.memref_slice %arg9[%181] : memref<2x!tpu.dma_semaphore, #tpu.memory_space<semaphore_mem>> -> memref<1x!tpu.dma_semaphore, #tpu.memory_space<semaphore_mem>>
      %303 = tpu.memref_squeeze %302 : memref<1x!tpu.dma_semaphore, #tpu.memory_space<semaphore_mem>> -> memref<!tpu.dma_semaphore, #tpu.memory_space<semaphore_mem>>
      tpu.enqueue_dma source(%299 : memref<1x128xf32, #tpu.memory_space<any>>) target(%301 : memref<1x128xf32, #tpu.memory_space<vmem>>) target_semaphore(%303 : memref<!tpu.dma_semaphore, #tpu.memory_space<semaphore_mem>>)
      %c15_i32_169 = arith.constant 15 : i32
      %304 = arith.addi %183, %c15_i32_169 : i32
      %305 = arith.index_cast %304 : i32 to index
      %306 = memref.load %arg2[%305] : memref<32xi32, #tpu.memory_space<smem>>
      %c0_i32_170 = arith.constant 0 : i32
      %307 = tpu.memref_slice %arg3[%306, %c0_i32_170] : memref<512x128xf32, #tpu.memory_space<any>> -> memref<1x128xf32, #tpu.memory_space<any>>
      %c15_i32_171 = arith.constant 15 : i32
      %c0_i32_172 = arith.constant 0 : i32
      %308 = tpu.memref_slice %arg8[%181, %c15_i32_171, %c0_i32_172] : memref<2x16x128xf32, #tpu.memory_space<vmem>> -> memref<1x1x128xf32, #tpu.memory_space<vmem>>
      %309 = tpu.memref_squeeze %308 : memref<1x1x128xf32, #tpu.memory_space<vmem>> -> memref<1x128xf32, #tpu.memory_space<vmem>>
      %310 = tpu.memref_slice %arg9[%181] : memref<2x!tpu.dma_semaphore, #tpu.memory_space<semaphore_mem>> -> memref<1x!tpu.dma_semaphore, #tpu.memory_space<semaphore_mem>>
      %311 = tpu.memref_squeeze %310 : memref<1x!tpu.dma_semaphore, #tpu.memory_space<semaphore_mem>> -> memref<!tpu.dma_semaphore, #tpu.memory_space<semaphore_mem>>
      tpu.enqueue_dma source(%307 : memref<1x128xf32, #tpu.memory_space<any>>) target(%309 : memref<1x128xf32, #tpu.memory_space<vmem>>) target_semaphore(%311 : memref<!tpu.dma_semaphore, #tpu.memory_space<semaphore_mem>>)
    } else {
    }
    %c16_i32_96 = arith.constant 16 : i32
    %146 = arith.muli %135, %c16_i32_96 : i32
    %147 = tpu.assume_multiple %146, 16 : i32
    %148 = arith.index_cast %136 : i32 to index
    %c0_97 = arith.constant 0 : index
    %c0_98 = arith.constant 0 : index
    %149 = vector.load %arg8[%148, %c0_97, %c0_98] : memref<2x16x128xf32, #tpu.memory_space<vmem>>, vector<1x16x128xf32>
    %150 = vector.shape_cast %149 : vector<1x16x128xf32> to vector<16x128xf32>
    %151 = arith.index_cast %147 : i32 to index
    %c0_99 = arith.constant 0 : index
    %152 = vector.load %arg4[%151, %c0_99] : memref<16x128xf32, #tpu.memory_space<vmem>>, vector<16x128xf32>
    %153 = arith.addf %150, %152 : vector<16x128xf32>
    %cst_100 = arith.constant dense<0.000000e+00> : vector<16xf32>
    %154 = vector.multi_reduction <add>, %153, %cst_100 [1] : vector<16x128xf32> to vector<16xf32>
    %155 = vector.shape_cast %154 : vector<16xf32> to vector<16x1xf32>
    %156 = arith.mulf %153, %153 : vector<16x128xf32>
    %cst_101 = arith.constant dense<0.000000e+00> : vector<16xf32>
    %157 = vector.multi_reduction <add>, %156, %cst_101 [1] : vector<16x128xf32> to vector<16xf32>
    %158 = vector.shape_cast %157 : vector<16xf32> to vector<16x1xf32>
    %159 = vector.broadcast %cst : f32 to vector<16x1xf32>
    %160 = arith.mulf %155, %159 : vector<16x1xf32>
    %161 = vector.broadcast %cst : f32 to vector<16x1xf32>
    %162 = arith.mulf %158, %161 : vector<16x1xf32>
    %163 = arith.mulf %160, %160 : vector<16x1xf32>
    %164 = arith.subf %162, %163 : vector<16x1xf32>
    %cst_102 = arith.constant 0.000000e+00 : f32
    %165 = vector.broadcast %cst_102 : f32 to vector<16x1xf32>
    %166 = arith.maximumf %164, %165 : vector<16x1xf32>
    %167 = vector.broadcast %160 : vector<16x1xf32> to vector<16x128xf32>
    %168 = arith.subf %153, %167 : vector<16x128xf32>
    %cst_103 = arith.constant 9.99999996E-13 : f32
    %169 = vector.broadcast %cst_103 : f32 to vector<16x1xf32>
    %170 = arith.addf %166, %169 : vector<16x1xf32>
    %171 = math.rsqrt %170 : vector<16x1xf32>
    %172 = vector.broadcast %171 : vector<16x1xf32> to vector<16x128xf32>
    %173 = arith.mulf %168, %172 : vector<16x128xf32>
    %174 = vector.broadcast %132 : vector<1x128xf32> to vector<16x128xf32>
    %175 = arith.mulf %173, %174 : vector<16x128xf32>
    %176 = vector.broadcast %133 : vector<1x128xf32> to vector<16x128xf32>
    %177 = arith.addf %175, %176 : vector<16x128xf32>
    %178 = arith.index_cast %147 : i32 to index
    %c0_104 = arith.constant 0 : index
    %179 = vector.load %arg7[%178, %c0_104] : memref<16x128xf32, #tpu.memory_space<vmem>>, vector<16x128xf32>
    tpu.vector_store %arg7[%178, %c0_104], %177 {strides = array<i32>} : memref<16x128xf32, #tpu.memory_space<vmem>>, vector<16x128xf32>,
    %c1_i32_105 = arith.constant 1 : i32
    return
  }
  func.func @transform_1(%arg0: i32, %arg1: i32, %arg2: memref<32xi32, #tpu.memory_space<smem>>) -> (i32, i32) {
    %c0_i32 = arith.constant 0 : i32
    %c0_i32_0 = arith.constant 0 : i32
    return %arg1, %c0_i32 : i32, i32
  }
  func.func @transform_2(%arg0: i32, %arg1: i32, %arg2: memref<32xi32, #tpu.memory_space<smem>>) -> (i32, i32) {
    %c0_i32 = arith.constant 0 : i32
    %c0_i32_0 = arith.constant 0 : i32
    %c0_i32_1 = arith.constant 0 : i32
    return %c0_i32, %c0_i32_0 : i32, i32
  }
  func.func @transform_3(%arg0: i32, %arg1: i32, %arg2: memref<32xi32, #tpu.memory_space<smem>>) -> (i32, i32) {
    %c0_i32 = arith.constant 0 : i32
    %c0_i32_0 = arith.constant 0 : i32
    %c0_i32_1 = arith.constant 0 : i32
    return %c0_i32, %c0_i32_0 : i32, i32
  }
  func.func @transform_4(%arg0: i32, %arg1: i32, %arg2: memref<32xi32, #tpu.memory_space<smem>>) -> (i32, i32) {
    %c1_i32 = arith.constant 1 : i32
    %0 = arith.muli %arg0, %c1_i32 : i32
    %1 = arith.addi %0, %arg1 : i32
    %c0_i32 = arith.constant 0 : i32
    %c0_i32_0 = arith.constant 0 : i32
    return %1, %c0_i32 : i32, i32
  }
}

</mosaic_0001>

<llo_original>
// kernel: tpu_custom_call.1
$region0: #{tpu_custom_call.1}
  #allocation0 [shape = 'u32[]', space=smem, size = 0x4, offset = 0x4, fixed_abs, tag = 'smem constant byte address 0x4 - core index']
  #allocation1 [shape = 'u32[72,128]{1,0:T(1,128)}', space=vmem, size = 0x9000, scoped, tag = 'internal scratch']
  #allocation2 [shape = 'f32[2,16,128]{2,1,0:T(8,128)}', space=vmem, size = 0x4000, scoped, tag = 'scratch operand']
  #allocation3 [shape = 's32[2]{0}', space=sflag, size = 0x8, scoped, tag = 'scratch operand']
  #allocation4 [shape = 's32[1]{0}', space=sflag, size = 0x4, scoped, tag = 'scoped memory for tpu_custom_call.1']
  #allocation5 [shape = 'u8[512]{0}', space=smem, size = 0x200, scoped, tag = 'prefetched SMEM operand 0']
  #allocation10 [shape = 's32[]', space=sflag, size = 0x4, offset = 0, fixed_abs, tag = 'sflag constant byte address 0x0 - dummy sync flag']
  #allocation11 [shape = 's32[]', space=sflag, size = 0x4, offset = 0, fixed_abs, tag = 'sflag constant byte address 0x0 - dummy sync flag']
  #allocation12 [shape = 'u32[]', space=smem, size = 0x4, offset = 0x44, fixed_abs, tag = 'smem constant byte address 0x44 - assertion arg 0']
  #allocation13 [shape = 'u32[]', space=smem, size = 0x4, offset = 0x48, fixed_abs, tag = 'smem constant byte address 0x48 - assertion arg 1']
  #allocation14 [shape = 's32[]', space=sflag, size = 0x4, offset = 0, fixed_abs, tag = 'sflag constant byte address 0x0 - dummy sync flag']
  #allocation15 [shape = 's32[]', space=sflag, size = 0x4, offset = 0, fixed_abs, tag = 'sflag constant byte address 0x0 - dummy sync flag']
  #allocation16 [shape = 's32[]', space=sflag, size = 0x4, offset = 0, fixed_abs, tag = 'sflag constant byte address 0x0 - dummy sync flag']
  #allocation17 [shape = 's32[]', space=sflag, size = 0x4, offset = 0, fixed_abs, tag = 'sflag constant byte address 0x0 - dummy sync flag']
  #allocation18 [shape = 's32[]', space=sflag, size = 0x4, offset = 0, fixed_abs, tag = 'sflag constant byte address 0x0 - dummy sync flag']
  #allocation19 [shape = 's32[]', space=sflag, size = 0x4, offset = 0, fixed_abs, tag = 'sflag constant byte address 0x0 - dummy sync flag']
  #allocation20 [shape = 's32[]', space=sflag, size = 0x4, offset = 0, fixed_abs, tag = 'sflag constant byte address 0x0 - dummy sync flag']
  #allocation21 [shape = 's32[]', space=sflag, size = 0x4, offset = 0, fixed_abs, tag = 'sflag constant byte address 0x0 - dummy sync flag']
  #allocation22 [shape = 's32[]', space=sflag, size = 0x4, offset = 0, fixed_abs, tag = 'sflag constant byte address 0x0 - dummy sync flag']
  #allocation23 [shape = 's32[]', space=sflag, size = 0x4, offset = 0, fixed_abs, tag = 'sflag constant byte address 0x0 - dummy sync flag']
  #allocation24 [shape = 's32[]', space=sflag, size = 0x4, offset = 0, fixed_abs, tag = 'sflag constant byte address 0x0 - dummy sync flag']
  #allocation25 [shape = 's32[]', space=sflag, size = 0x4, offset = 0, fixed_abs, tag = 'sflag constant byte address 0x0 - dummy sync flag']
  #allocation26 [shape = 's32[]', space=sflag, size = 0x4, offset = 0, fixed_abs, tag = 'sflag constant byte address 0x0 - dummy sync flag']
  #allocation27 [shape = 's32[]', space=sflag, size = 0x4, offset = 0, fixed_abs, tag = 'sflag constant byte address 0x0 - dummy sync flag']
  #allocation28 [shape = 's32[]', space=sflag, size = 0x4, offset = 0, fixed_abs, tag = 'sflag constant byte address 0x0 - dummy sync flag']
  #allocation29 [shape = 's32[]', space=sflag, size = 0x4, offset = 0, fixed_abs, tag = 'sflag constant byte address 0x0 - dummy sync flag']
  #allocation30 [shape = 's32[]', space=sflag, size = 0x4, offset = 0, fixed_abs, tag = 'sflag constant byte address 0x0 - dummy sync flag']
  #allocation31 [shape = 's32[]', space=sflag, size = 0x4, offset = 0, fixed_abs, tag = 'sflag constant byte address 0x0 - dummy sync flag']
  #allocation32 [shape = 's32[]', space=sflag, size = 0x4, offset = 0, fixed_abs, tag = 'sflag constant byte address 0x0 - dummy sync flag']
  #allocation33 [shape = 's32[]', space=sflag, size = 0x4, offset = 0, fixed_abs, tag = 'sflag constant byte address 0x0 - dummy sync flag']
  #allocation34 [shape = 's32[]', space=sflag, size = 0x4, offset = 0, fixed_abs, tag = 'sflag constant byte address 0x0 - dummy sync flag']
  #allocation35 [shape = 's32[]', space=sflag, size = 0x4, offset = 0, fixed_abs, tag = 'sflag constant byte address 0x0 - dummy sync flag']
  #allocation36 [shape = 's32[]', space=sflag, size = 0x4, offset = 0, fixed_abs, tag = 'sflag constant byte address 0x0 - dummy sync flag']
  #allocation37 [shape = 's32[]', space=sflag, size = 0x4, offset = 0, fixed_abs, tag = 'sflag constant byte address 0x0 - dummy sync flag']
  #allocation38 [shape = 's32[]', space=sflag, size = 0x4, offset = 0, fixed_abs, tag = 'sflag constant byte address 0x0 - dummy sync flag']
  #allocation39 [shape = 's32[]', space=sflag, size = 0x4, offset = 0, fixed_abs, tag = 'sflag constant byte address 0x0 - dummy sync flag']
  #allocation40 [shape = 's32[]', space=sflag, size = 0x4, offset = 0, fixed_abs, tag = 'sflag constant byte address 0x0 - dummy sync flag']
  #allocation41 [shape = 's32[]', space=sflag, size = 0x4, offset = 0, fixed_abs, tag = 'sflag constant byte address 0x0 - dummy sync flag']
  #allocation42 [shape = 's32[]', space=sflag, size = 0x4, offset = 0, fixed_abs, tag = 'sflag constant byte address 0x0 - dummy sync flag']
  #allocation43 [shape = 's32[]', space=sflag, size = 0x4, offset = 0, fixed_abs, tag = 'sflag constant byte address 0x0 - dummy sync flag']
  %s0 = inlined_call_operand.hbm [shape: s32[32], index: 0, kind: input, shape index: {}]
  %s1 = inlined_call_operand.hbm [shape: f32[512,128], index: 1, kind: input, shape index: {}]
  %s2 = inlined_call_operand.hbm [shape: f32[32,128], index: 2, kind: input, shape index: {}]
  %s3 = inlined_call_operand.vmem [shape: f32[1,128], index: 3, kind: input, shape index: {}]
  %s4 = inlined_call_operand.vmem [shape: f32[1,128], index: 4, kind: input, shape index: {}]
  %s5 = inlined_call_operand.hbm [shape: f32[32,128], index: 5, kind: output, shape index: {}]
  %s6 = sld [smem:[#allocation0]]
  $region113: #{tpu_custom_call.1} parent=0
    _
  %s8 = ssub.s32 1, %s6
  %s9 = scalar_select 0, %s8, %s6
  %s11 = sshll.u32 %s0, 4
  %s12 = int_to_ptr.hbm [resolvable:$true] %s11
  %14 = dma.hbm_to_smem %s12, 16, [#allocation5], [#allocation4]
  %16 = dma.done [#allocation4], 16
  %17 = sfence
  $region1: #{tpu_custom_call.1} parent=0
    #allocation6 [shape = 'u8[8192]{0}', space=vmem, size = 0x2000, scoped, tag = 'input window, operand 2, single buffered']
    #allocation7 [shape = 's32[2]{0}', space=sflag, size = 0x8, scoped, tag = 'scoped memory for tpu_custom_call.1']
    #allocation8 [shape = 's32[2]{0}', space=sflag, size = 0x8, scoped, tag = 'scoped memory for tpu_custom_call.1']
    #allocation9 [shape = 'u8[16384]{0}', space=vmem, size = 0x4000, scoped, tag = 'output window, operand 0']
    %18 = vsyncpa [#allocation7], 0
    %19 = vsyncpa [#allocation8], 0
    %s20 = scalar_lea.sflag [#allocation8], 1
    %21 = vsyncpa %s20, 0
    loop: start=0, step=1, limit=4
    $region2: #{tpu_custom_call.1} parent=1 // loop_pre_header
      _
    $region3: #{tpu_custom_call.1} parent=1 // loop_header
      %s23 = sphi 0, %s27
      %p24 = scmp.ge.s32.totalorder %s23, 4
      %s30 = sphi 0, %s42
      %s31 = sphi 0, %s38
      %s32 = sphi 0, %s30
      %s33 = sphi 0, %s31
      %s34 = sphi 0, %s32
      %s35 = sphi 0, %s33
      %s45 = sphi 0, %s47
      %s48 = sphi 0, %s45
      %s49 = sphi 0, %s48
      %s65 = sphi 0, %s49
      %s69 = sphi 0, %s69
      %s71 = sphi 0, %s69
      %s72 = sphi 0, %s71
      %s86 = sphi 0, %s72
      %s90 = sphi 0, %s90
      %s92 = sphi 0, %s90
      %s93 = sphi 0, %s92
      %s107 = sphi 0, %s93
      %s115 = sphi 0, %s117
      %s118 = sphi 0, %s115
      %s119 = sphi 0, %s118
      %s135 = sphi 0, %s119
    $region4: #{tpu_custom_call.1} parent=1 // loop_header_branch
      %26 = sbr.rel (%p24) target = $region8
    $region5: #{tpu_custom_call.1} parent=1 // loop_body
      %s28 = ssub.s32 %s23, 1
      %s29 = ssub.s32 %s23, 2
      %s36 = sadd.s32 1, %s31
      %p37 = scmp.ge.s32.totalorder %s36, 1
      %s38 = scalar_select %p37, 0, %s36
      %s39 = sadd.s32 1, %s30
      %s40 = scalar_select %p37, %s39, %s30
      %p41 = scmp.ge.s32.totalorder %s40, 2
      %s42 = scalar_select %p41, 0, %s40
      %s43 = ssub.s32 %s31, %s38
      %p44 = scmp.eq.s32.totalorder %s43, 0
      %s46 = sadd.s32 %s45, 1
      %s47 = scalar_select %p44, %s45, %s46
      %p50 = pneg %p44
      %p51 = scmp.eq.s32.totalorder %s23, 1
      %p52 = por %p50, %p51
      %p53 = scmp.ne.s32.totalorder %s45, %s48
      %p54 = scmp.eq.s32.totalorder %s23, 0
      %p55 = por %p53, %p54
      %p56 = scmp.ne.s32.totalorder %s45, %s48
      %p57 = scmp.eq.s32.totalorder %s28, 1
      %p58 = por %p56, %p57
      %p59 = scmp.ne.s32.totalorder %s48, %s49
      %p60 = scmp.eq.s32.totalorder %s28, 0
      %p61 = por %p59, %p60
      %p62 = scmp.ne.s32.totalorder %s48, %s49
      %p63 = scmp.eq.s32.totalorder %s29, 1
      %p64 = por %p62, %p63
      %p66 = scmp.ne.s32.totalorder %s49, %s65
      %p67 = scmp.eq.s32.totalorder %s29, 0
      %p68 = por %p66, %p67
      %s70 = sadd.s32 %s69, 1
      %p73 = scmp.eq.s32.totalorder %s23, 1
      %p74 = scmp.ne.s32.totalorder %s69, %s71
      %p75 = scmp.eq.s32.totalorder %s23, 0
      %p76 = por %p74, %p75
      %p77 = scmp.ne.s32.totalorder %s69, %s71
      %p78 = scmp.eq.s32.totalorder %s28, 1
      %p79 = por %p77, %p78
      %p80 = scmp.ne.s32.totalorder %s71, %s72
      %p81 = scmp.eq.s32.totalorder %s28, 0
      %p82 = por %p80, %p81
      %p83 = scmp.ne.s32.totalorder %s71, %s72
      %p84 = scmp.eq.s32.totalorder %s29, 1
      %p85 = por %p83, %p84
      %p87 = scmp.ne.s32.totalorder %s72, %s86
      %p88 = scmp.eq.s32.totalorder %s29, 0
      %p89 = por %p87, %p88
      %s91 = sadd.s32 %s90, 1
      %p94 = scmp.eq.s32.totalorder %s23, 1
      %p95 = scmp.ne.s32.totalorder %s90, %s92
      %p96 = scmp.eq.s32.totalorder %s23, 0
      %p97 = por %p95, %p96
      %p98 = scmp.ne.s32.totalorder %s90, %s92
      %p99 = scmp.eq.s32.totalorder %s28, 1
      %p100 = por %p98, %p99
      %p101 = scmp.ne.s32.totalorder %s92, %s93
      %p102 = scmp.eq.s32.totalorder %s28, 0
      %p103 = por %p101, %p102
      %p104 = scmp.ne.s32.totalorder %s92, %s93
      %p105 = scmp.eq.s32.totalorder %s29, 1
      %p106 = por %p104, %p105
      %p108 = scmp.ne.s32.totalorder %s93, %s107
      %p109 = scmp.eq.s32.totalorder %s29, 0
      %p110 = por %p108, %p109
      %s111 = sadd.s32 %s30, %s31
      %s112 = sadd.s32 %s42, %s38
      %s113 = ssub.s32 %s111, %s112
      %p114 = scmp.eq.s32.totalorder %s113, 0
      %s116 = sadd.s32 %s115, 1
      %s117 = scalar_select %p114, %s115, %s116
      %p120 = pneg %p114
      %p121 = scmp.eq.s32.totalorder %s23, 1
      %p122 = por %p120, %p121
      %p123 = scmp.ne.s32.totalorder %s115, %s118
      %p124 = scmp.eq.s32.totalorder %s23, 0
      %p125 = por %p123, %p124
      %p126 = scmp.ne.s32.totalorder %s115, %s118
      %p127 = scmp.eq.s32.totalorder %s28, 1
      %p128 = por %p126, %p127
      %p129 = scmp.ne.s32.totalorder %s118, %s119
      %p130 = scmp.eq.s32.totalorder %s28, 0
      %p131 = por %p129, %p130
      %p132 = scmp.ne.s32.totalorder %s118, %s119
      %p133 = scmp.eq.s32.totalorder %s29, 1
      %p134 = por %p132, %p133
      %p136 = scmp.ne.s32.totalorder %s119, %s135
      %p137 = scmp.eq.s32.totalorder %s29, 0
      %p138 = por %p136, %p137
      %p139 = scmp.le.s32.totalorder 1, %s23
      %p140 = scmp.lt.s32.totalorder %s23, 3
      %p141 = pnand %p139, %p140
      %p142 = pneg %p141
      // Predicated region
      $region9: #{tpu_custom_call.1} parent=5 // pred_check
        _
      $region10: #{tpu_custom_call.1} parent=5 // pred_check_branch
        %144 = sbr.rel (%p141) target = $region12
      $region11: #{tpu_custom_call.1} parent=5 // pred_region
        %s145 = ssub.s32 %s23, 1
        // Predicated region
        $region13: #{tpu_custom_call.1} parent=11 // pred_check
          %p146 = pneg %p61
        $region14: #{tpu_custom_call.1} parent=11 // pred_check_branch
          %148 = sbr.rel (%p146) target = $region16
        $region15: #{tpu_custom_call.1} parent=11 // pred_region
          %s149 = smul.u32 2, %s33
          %151 = vsyncadd [#allocation7], 0
          %s152 = smul.addr %s149, 8
          %s153 = scalar_lea.hbm %s2, %s152
          %s154 = sshll.u32 %s153, 4
          %s155 = int_to_ptr.hbm [resolvable:$true] %s154
          %s156 = sshll.u32 [#allocation6], 4
          %s157 = int_to_ptr.vmem [resolvable:$true] %s156
          %162 = dma.hbm_to_vmem [thread:$0]  %s155, 256, %s157, [#allocation7], 128, 128, 8
        $region16: #{tpu_custom_call.1} parent=11 // pred_fallthru
          _
        // Predicated region
        $region17: #{tpu_custom_call.1} parent=11 // pred_check
          %p163 = pneg %p82
        $region18: #{tpu_custom_call.1} parent=11 // pred_check_branch
          %165 = sbr.rel (%p163) target = $region20
        $region19: #{tpu_custom_call.1} parent=11 // pred_region
          _
        $region20: #{tpu_custom_call.1} parent=11 // pred_fallthru
          _
        // Predicated region
        $region21: #{tpu_custom_call.1} parent=11 // pred_check
          %p166 = pneg %p103
        $region22: #{tpu_custom_call.1} parent=11 // pred_check_branch
          %168 = sbr.rel (%p166) target = $region24
        $region23: #{tpu_custom_call.1} parent=11 // pred_region
          _
        $region24: #{tpu_custom_call.1} parent=11 // pred_fallthru
          _
      $region12: #{tpu_custom_call.1} parent=5 // pred_fallthru
        _
      %p169 = scmp.lt.s32.totalorder %s23, 2
      // Predicated region
      $region25: #{tpu_custom_call.1} parent=5 // pred_check
        %p170 = pneg %p169
      $region26: #{tpu_custom_call.1} parent=5 // pred_check_branch
        %172 = sbr.rel (%p170) target = $region28
      $region27: #{tpu_custom_call.1} parent=5 // pred_region
        _
      $region28: #{tpu_custom_call.1} parent=5 // pred_fallthru
        _
      %p173 = scmp.le.s32.totalorder 1, %s23
      %p174 = scmp.lt.s32.totalorder %s23, 3
      %p175 = pnand %p173, %p174
      %p176 = pneg %p175
      // Predicated region
      $region29: #{tpu_custom_call.1} parent=5 // pred_check
        _
      $region30: #{tpu_custom_call.1} parent=5 // pred_check_branch
        %178 = sbr.rel (%p175) target = $region32
      $region31: #{tpu_custom_call.1} parent=5 // pred_region
        %s179 = ssub.s32 %s23, 1
        // Predicated region
        $region33: #{tpu_custom_call.1} parent=31 // pred_check
          %p180 = pneg %p61
        $region34: #{tpu_custom_call.1} parent=31 // pred_check_branch
          %182 = sbr.rel (%p180) target = $region36
        $region35: #{tpu_custom_call.1} parent=31 // pred_region
          %184 = dma.done [#allocation7], 256
        $region36: #{tpu_custom_call.1} parent=31 // pred_fallthru
          _
        %p185 = pneg %p61
        %p186 = pneg %p58
        %p187 = pneg %p82
        %p188 = pneg %p79
        %p189 = pneg %p103
        %p190 = pneg %p100
        %p191 = pneg %p131
        %p192 = pneg %p128
        %s193 = sand.u32 %s118, 1
        %s194 = scalar_lea.sflag [#allocation8], %s193
        %s195 = sand.u32 %s118, 1
        %s196 = smul.addr %s195, 16
        %s197 = scalar_lea.vmem [#allocation9], %s196
        %s198 = smul.u32 2, %s33
        %s199 = sadd.s32 %s32, %s33
        %s200 = smul.u32 2, %s199
        %s201 = smul.u32 %s32, 16
        %s202 = smul.u32 %s33, 16
        %s203 = sadd.s32 %s201, %s202
        %s204 = sld [smem:[#allocation5 + %s203]]
        %s205 = scalar_lea.hbm %s1, %s204
        // Predicated region
        $region37: #{tpu_custom_call.1} parent=31 // pred_check
          _
        $region38: #{tpu_custom_call.1} parent=31 // pred_check_branch
          %207 = sbr.rel target = $region40
        $region39: #{tpu_custom_call.1} parent=31 // pred_region
          %208 = sst [smem:[#allocation12]] [#allocation11]
          %209 = sst [smem:[#allocation13]] [#allocation10]
        $region40: #{tpu_custom_call.1} parent=31 // pred_fallthru
          _
        %211 = shalt.err (0)
        %s213 = sshll.u32 %s205, 4
        %s214 = int_to_ptr.hbm [resolvable:$true] %s213
        %s215 = sshll.u32 [#allocation2], 4
        %s216 = int_to_ptr.vmem [resolvable:$true] %s215
        %218 = dma.hbm_to_vmem [thread:$0]  %s214, 16, %s216, [#allocation3]
        %s219 = sadd.s32 %s203, 1
        %s220 = sld [smem:[#allocation5 + %s219]]
        %s221 = scalar_lea.hbm %s1, %s220
        %s222 = scalar_lea.vmem [#allocation2], 1
        // Predicated region
        $region41: #{tpu_custom_call.1} parent=31 // pred_check
          _
        $region42: #{tpu_custom_call.1} parent=31 // pred_check_branch
          %224 = sbr.rel target = $region44
        $region43: #{tpu_custom_call.1} parent=31 // pred_region
          %225 = sst [smem:[#allocation12]] [#allocation15]
          %226 = sst [smem:[#allocation13]] [#allocation14]
        $region44: #{tpu_custom_call.1} parent=31 // pred_fallthru
          _
        %228 = shalt.err (0)
        %s230 = sshll.u32 %s221, 4
        %s231 = int_to_ptr.hbm [resolvable:$true] %s230
        %s232 = sshll.u32 %s222, 4
        %s233 = int_to_ptr.vmem [resolvable:$true] %s232
        %235 = dma.hbm_to_vmem [thread:$0]  %s231, 16, %s233, [#allocation3]
        %s236 = sadd.s32 %s203, 2
        %s237 = sld [smem:[#allocation5 + %s236]]
        %s238 = scalar_lea.hbm %s1, %s237
        %s239 = scalar_lea.vmem [#allocation2], 2
        // Predicated region
        $region45: #{tpu_custom_call.1} parent=31 // pred_check
          _
        $region46: #{tpu_custom_call.1} parent=31 // pred_check_branch
          %241 = sbr.rel target = $region48
        $region47: #{tpu_custom_call.1} parent=31 // pred_region
          %242 = sst [smem:[#allocation12]] [#allocation17]
          %243 = sst [smem:[#allocation13]] [#allocation16]
        $region48: #{tpu_custom_call.1} parent=31 // pred_fallthru
          _
        %245 = shalt.err (0)
        %s247 = sshll.u32 %s238, 4
        %s248 = int_to_ptr.hbm [resolvable:$true] %s247
        %s249 = sshll.u32 %s239, 4
        %s250 = int_to_ptr.vmem [resolvable:$true] %s249
        %252 = dma.hbm_to_vmem [thread:$0]  %s248, 16, %s250, [#allocation3]
        %s253 = sadd.s32 %s203, 3
        %s254 = sld [smem:[#allocation5 + %s253]]
        %s255 = scalar_lea.hbm %s1, %s254
        %s256 = scalar_lea.vmem [#allocation2], 3
        // Predicated region
        $region49: #{tpu_custom_call.1} parent=31 // pred_check
          _
        $region50: #{tpu_custom_call.1} parent=31 // pred_check_branch
          %258 = sbr.rel target = $region52
        $region51: #{tpu_custom_call.1} parent=31 // pred_region
          %259 = sst [smem:[#allocation12]] [#allocation19]
          %260 = sst [smem:[#allocation13]] [#allocation18]
        $region52: #{tpu_custom_call.1} parent=31 // pred_fallthru
          _
        %262 = shalt.err (0)
        %s264 = sshll.u32 %s255, 4
        %s265 = int_to_ptr.hbm [resolvable:$true] %s264
        %s266 = sshll.u32 %s256, 4
        %s267 = int_to_ptr.vmem [resolvable:$true] %s266
        %269 = dma.hbm_to_vmem [thread:$0]  %s265, 16, %s267, [#allocation3]
        %s270 = sadd.s32 %s203, 4
        %s271 = sld [smem:[#allocation5 + %s270]]
        %s272 = scalar_lea.hbm %s1, %s271
        %s273 = scalar_lea.vmem [#allocation2], 4
        // Predicated region
        $region53: #{tpu_custom_call.1} parent=31 // pred_check
          _
        $region54: #{tpu_custom_call.1} parent=31 // pred_check_branch
          %275 = sbr.rel target = $region56
        $region55: #{tpu_custom_call.1} parent=31 // pred_region
          %276 = sst [smem:[#allocation12]] [#allocation21]
          %277 = sst [smem:[#allocation13]] [#allocation20]
        $region56: #{tpu_custom_call.1} parent=31 // pred_fallthru
          _
        %279 = shalt.err (0)
        %s281 = sshll.u32 %s272, 4
        %s282 = int_to_ptr.hbm [resolvable:$true] %s281
        %s283 = sshll.u32 %s273, 4
        %s284 = int_to_ptr.vmem [resolvable:$true] %s283
        %286 = dma.hbm_to_vmem [thread:$0]  %s282, 16, %s284, [#allocation3]
        %s287 = sadd.s32 %s203, 5
        %s288 = sld [smem:[#allocation5 + %s287]]
        %s289 = scalar_lea.hbm %s1, %s288
        %s290 = scalar_lea.vmem [#allocation2], 5
        // Predicated region
        $region57: #{tpu_custom_call.1} parent=31 // pred_check
          _
        $region58: #{tpu_custom_call.1} parent=31 // pred_check_branch
          %292 = sbr.rel target = $region60
        $region59: #{tpu_custom_call.1} parent=31 // pred_region
          %293 = sst [smem:[#allocation12]] [#allocation23]
          %294 = sst [smem:[#allocation13]] [#allocation22]
        $region60: #{tpu_custom_call.1} parent=31 // pred_fallthru
          _
        %296 = shalt.err (0)
        %s298 = sshll.u32 %s289, 4
        %s299 = int_to_ptr.hbm [resolvable:$true] %s298
        %s300 = sshll.u32 %s290, 4
        %s301 = int_to_ptr.vmem [resolvable:$true] %s300
        %303 = dma.hbm_to_vmem [thread:$0]  %s299, 16, %s301, [#allocation3]
        %s304 = sadd.s32 %s203, 6
        %s305 = sld [smem:[#allocation5 + %s304]]
        %s306 = scalar_lea.hbm %s1, %s305
        %s307 = scalar_lea.vmem [#allocation2], 6
        // Predicated region
        $region61: #{tpu_custom_call.1} parent=31 // pred_check
          _
        $region62: #{tpu_custom_call.1} parent=31 // pred_check_branch
          %309 = sbr.rel target = $region64
        $region63: #{tpu_custom_call.1} parent=31 // pred_region
          %310 = sst [smem:[#allocation12]] [#allocation25]
          %311 = sst [smem:[#allocation13]] [#allocation24]
        $region64: #{tpu_custom_call.1} parent=31 // pred_fallthru
          _
        %313 = shalt.err (0)
        %s315 = sshll.u32 %s306, 4
        %s316 = int_to_ptr.hbm [resolvable:$true] %s315
        %s317 = sshll.u32 %s307, 4
        %s318 = int_to_ptr.vmem [resolvable:$true] %s317
        %320 = dma.hbm_to_vmem [thread:$0]  %s316, 16, %s318, [#allocation3]
        %s321 = sadd.s32 %s203, 7
        %s322 = sld [smem:[#allocation5 + %s321]]
        %s323 = scalar_lea.hbm %s1, %s322
        %s324 = scalar_lea.vmem [#allocation2], 7
        // Predicated region
        $region65: #{tpu_custom_call.1} parent=31 // pred_check
          _
        $region66: #{tpu_custom_call.1} parent=31 // pred_check_branch
          %326 = sbr.rel target = $region68
        $region67: #{tpu_custom_call.1} parent=31 // pred_region
          %327 = sst [smem:[#allocation12]] [#allocation27]
          %328 = sst [smem:[#allocation13]] [#allocation26]
        $region68: #{tpu_custom_call.1} parent=31 // pred_fallthru
          _
        %330 = shalt.err (0)
        %s332 = sshll.u32 %s323, 4
        %s333 = int_to_ptr.hbm [resolvable:$true] %s332
        %s334 = sshll.u32 %s324, 4
        %s335 = int_to_ptr.vmem [resolvable:$true] %s334
        %337 = dma.hbm_to_vmem [thread:$0]  %s333, 16, %s335, [#allocation3]
        %s338 = sadd.s32 %s203, 8
        %s339 = sld [smem:[#allocation5 + %s338]]
        %s340 = scalar_lea.hbm %s1, %s339
        %s341 = scalar_lea.vmem [#allocation2], 8
        // Predicated region
        $region69: #{tpu_custom_call.1} parent=31 // pred_check
          _
        $region70: #{tpu_custom_call.1} parent=31 // pred_check_branch
          %343 = sbr.rel target = $region72
        $region71: #{tpu_custom_call.1} parent=31 // pred_region
          %344 = sst [smem:[#allocation12]] [#allocation29]
          %345 = sst [smem:[#allocation13]] [#allocation28]
        $region72: #{tpu_custom_call.1} parent=31 // pred_fallthru
          _
        %347 = shalt.err (0)
        %s349 = sshll.u32 %s340, 4
        %s350 = int_to_ptr.hbm [resolvable:$true] %s349
        %s351 = sshll.u32 %s341, 4
        %s352 = int_to_ptr.vmem [resolvable:$true] %s351
        %354 = dma.hbm_to_vmem [thread:$0]  %s350, 16, %s352, [#allocation3]
        %s355 = sadd.s32 %s203, 9
        %s356 = sld [smem:[#allocation5 + %s355]]
        %s357 = scalar_lea.hbm %s1, %s356
        %s358 = scalar_lea.vmem [#allocation2], 9
        // Predicated region
        $region73: #{tpu_custom_call.1} parent=31 // pred_check
          _
        $region74: #{tpu_custom_call.1} parent=31 // pred_check_branch
          %360 = sbr.rel target = $region76
        $region75: #{tpu_custom_call.1} parent=31 // pred_region
          %361 = sst [smem:[#allocation12]] [#allocation31]
          %362 = sst [smem:[#allocation13]] [#allocation30]
        $region76: #{tpu_custom_call.1} parent=31 // pred_fallthru
          _
        %364 = shalt.err (0)
        %s366 = sshll.u32 %s357, 4
        %s367 = int_to_ptr.hbm [resolvable:$true] %s366
        %s368 = sshll.u32 %s358, 4
        %s369 = int_to_ptr.vmem [resolvable:$true] %s368
        %371 = dma.hbm_to_vmem [thread:$0]  %s367, 16, %s369, [#allocation3]
        %s372 = sadd.s32 %s203, 10
        %s373 = sld [smem:[#allocation5 + %s372]]
        %s374 = scalar_lea.hbm %s1, %s373
        %s375 = scalar_lea.vmem [#allocation2], 10
        // Predicated region
        $region77: #{tpu_custom_call.1} parent=31 // pred_check
          _
        $region78: #{tpu_custom_call.1} parent=31 // pred_check_branch
          %377 = sbr.rel target = $region80
        $region79: #{tpu_custom_call.1} parent=31 // pred_region
          %378 = sst [smem:[#allocation12]] [#allocation33]
          %379 = sst [smem:[#allocation13]] [#allocation32]
        $region80: #{tpu_custom_call.1} parent=31 // pred_fallthru
          _
        %381 = shalt.err (0)
        %s383 = sshll.u32 %s374, 4
        %s384 = int_to_ptr.hbm [resolvable:$true] %s383
        %s385 = sshll.u32 %s375, 4
        %s386 = int_to_ptr.vmem [resolvable:$true] %s385
        %388 = dma.hbm_to_vmem [thread:$0]  %s384, 16, %s386, [#allocation3]
        %s389 = sadd.s32 %s203, 11
        %s390 = sld [smem:[#allocation5 + %s389]]
        %s391 = scalar_lea.hbm %s1, %s390
        %s392 = scalar_lea.vmem [#allocation2], 11
        // Predicated region
        $region81: #{tpu_custom_call.1} parent=31 // pred_check
          _
        $region82: #{tpu_custom_call.1} parent=31 // pred_check_branch
          %394 = sbr.rel target = $region84
        $region83: #{tpu_custom_call.1} parent=31 // pred_region
          %395 = sst [smem:[#allocation12]] [#allocation35]
          %396 = sst [smem:[#allocation13]] [#allocation34]
        $region84: #{tpu_custom_call.1} parent=31 // pred_fallthru
          _
        %398 = shalt.err (0)
        %s400 = sshll.u32 %s391, 4
        %s401 = int_to_ptr.hbm [resolvable:$true] %s400
        %s402 = sshll.u32 %s392, 4
        %s403 = int_to_ptr.vmem [resolvable:$true] %s402
        %405 = dma.hbm_to_vmem [thread:$0]  %s401, 16, %s403, [#allocation3]
        %s406 = sadd.s32 %s203, 12
        %s407 = sld [smem:[#allocation5 + %s406]]
        %s408 = scalar_lea.hbm %s1, %s407
        %s409 = scalar_lea.vmem [#allocation2], 12
        // Predicated region
        $region85: #{tpu_custom_call.1} parent=31 // pred_check
          _
        $region86: #{tpu_custom_call.1} parent=31 // pred_check_branch
          %411 = sbr.rel target = $region88
        $region87: #{tpu_custom_call.1} parent=31 // pred_region
          %412 = sst [smem:[#allocation12]] [#allocation37]
          %413 = sst [smem:[#allocation13]] [#allocation36]
        $region88: #{tpu_custom_call.1} parent=31 // pred_fallthru
          _
        %415 = shalt.err (0)
        %s417 = sshll.u32 %s408, 4
        %s418 = int_to_ptr.hbm [resolvable:$true] %s417
        %s419 = sshll.u32 %s409, 4
        %s420 = int_to_ptr.vmem [resolvable:$true] %s419
        %422 = dma.hbm_to_vmem [thread:$0]  %s418, 16, %s420, [#allocation3]
        %s423 = sadd.s32 %s203, 13
        %s424 = sld [smem:[#allocation5 + %s423]]
        %s425 = scalar_lea.hbm %s1, %s424
        %s426 = scalar_lea.vmem [#allocation2], 13
        // Predicated region
        $region89: #{tpu_custom_call.1} parent=31 // pred_check
          _
        $region90: #{tpu_custom_call.1} parent=31 // pred_check_branch
          %428 = sbr.rel target = $region92
        $region91: #{tpu_custom_call.1} parent=31 // pred_region
          %429 = sst [smem:[#allocation12]] [#allocation39]
          %430 = sst [smem:[#allocation13]] [#allocation38]
        $region92: #{tpu_custom_call.1} parent=31 // pred_fallthru
          _
        %432 = shalt.err (0)
        %s434 = sshll.u32 %s425, 4
        %s435 = int_to_ptr.hbm [resolvable:$true] %s434
        %s436 = sshll.u32 %s426, 4
        %s437 = int_to_ptr.vmem [resolvable:$true] %s436
        %439 = dma.hbm_to_vmem [thread:$0]  %s435, 16, %s437, [#allocation3]
        %s440 = sadd.s32 %s203, 14
        %s441 = sld [smem:[#allocation5 + %s440]]
        %s442 = scalar_lea.hbm %s1, %s441
        %s443 = scalar_lea.vmem [#allocation2], 14
        // Predicated region
        $region93: #{tpu_custom_call.1} parent=31 // pred_check
          _
        $region94: #{tpu_custom_call.1} parent=31 // pred_check_branch
          %445 = sbr.rel target = $region96
        $region95: #{tpu_custom_call.1} parent=31 // pred_region
          %446 = sst [smem:[#allocation12]] [#allocation41]
          %447 = sst [smem:[#allocation13]] [#allocation40]
        $region96: #{tpu_custom_call.1} parent=31 // pred_fallthru
          _
        %449 = shalt.err (0)
        %s451 = sshll.u32 %s442, 4
        %s452 = int_to_ptr.hbm [resolvable:$true] %s451
        %s453 = sshll.u32 %s443, 4
        %s454 = int_to_ptr.vmem [resolvable:$true] %s453
        %456 = dma.hbm_to_vmem [thread:$0]  %s452, 16, %s454, [#allocation3]
        %s457 = sadd.s32 %s203, 15
        %s458 = sld [smem:[#allocation5 + %s457]]
        %s459 = scalar_lea.hbm %s1, %s458
        %s460 = scalar_lea.vmem [#allocation2], 15
        // Predicated region
        $region97: #{tpu_custom_call.1} parent=31 // pred_check
          _
        $region98: #{tpu_custom_call.1} parent=31 // pred_check_branch
          %462 = sbr.rel target = $region100
        $region99: #{tpu_custom_call.1} parent=31 // pred_region
          %463 = sst [smem:[#allocation12]] [#allocation43]
          %464 = sst [smem:[#allocation13]] [#allocation42]
        $region100: #{tpu_custom_call.1} parent=31 // pred_fallthru
          _
        %466 = shalt.err (0)
        %s468 = sshll.u32 %s459, 4
        %s469 = int_to_ptr.hbm [resolvable:$true] %s468
        %s470 = sshll.u32 %s460, 4
        %s471 = int_to_ptr.vmem [resolvable:$true] %s470
        %473 = dma.hbm_to_vmem [thread:$0]  %s469, 16, %s471, [#allocation3]
        %v474 = vld [vmem:[%s3] sm:$0x1]
        %v475 = vld [vmem:[%s4] sm:$0x1]
        %s476 = smul.u32 16, 1
        %s477 = sshll.u32 %s476, 4
        %478 = dma.done [#allocation3], %s477
        %v479 = vld [vmem:[#allocation2] sm:$0xff]
        %v480 = vld [vmem:[#allocation2 + $0x8] sm:$0xff]
        %v481 = vld [vmem:[#allocation6] sm:$0xff]
        %v482 = vld [vmem:[#allocation6 + $0x8] sm:$0xff]
        %v483 = vadd.f32 %v479, %v481
        %v484 = vadd.f32 %v480, %v482
        %485 = vadd.xlane.f32.xlu0 %v483
        %v486 = vpop.xlane.xlu0 %485
        %487 = vadd.xlane.f32.xlu0 %v484
        %v488 = vpop.xlane.xlu0 %487
        %v489 = vmul.f32 %v483, %v483
        %v490 = vmul.f32 %v484, %v484
        %491 = vadd.xlane.f32.xlu0 %v489
        %v492 = vpop.xlane.xlu0 %491
        %493 = vadd.xlane.f32.xlu0 %v490
        %v494 = vpop.xlane.xlu0 %493
        %v495 = vmul.f32 %v486, 0.0078125
        %v496 = vmul.f32 %v488, 0.0078125
        %v497 = vmul.f32 %v492, 0.0078125
        %v498 = vmul.f32 %v494, 0.0078125
        %v499 = vmul.f32 %v495, %v495
        %v500 = vmul.f32 %v496, %v496
        %v501 = vsub.f32 %v497, %v499
        %v502 = vsub.f32 %v498, %v500
        %v503 = vmax.f32 %v501, 0.0
        %v504 = vmax.f32 %v502, 0.0
        %v505 = vsub.f32 %v483, %v495
        %v506 = vsub.f32 %v484, %v496
        %v507 = vadd.f32 %v503, 1e-12
        %v508 = vadd.f32 %v504, 1e-12
        %v509 = vrsqrt.pop %v507
        %v510 = vmul.f32 %v509, %v507
        %v511 = vmul.f32 %v510, %v509
        %v512 = vmul.f32 0.5, %v511
        %v513 = vsub.f32 1.5, %v512
        %v514 = vmul.f32 %v509, %v513
        %vm515 = vweird.f32 %v507
        %vm516 = vweird.f32 %v509
        %vm517 = vmor %vm515, %vm516
        %v518 = vsel %vm517, %v509, %v514
        %v519 = vrsqrt.pop %v508
        %v520 = vmul.f32 %v519, %v508
        %v521 = vmul.f32 %v520, %v519
        %v522 = vmul.f32 0.5, %v521
        %v523 = vsub.f32 1.5, %v522
        %v524 = vmul.f32 %v519, %v523
        %vm525 = vweird.f32 %v508
        %vm526 = vweird.f32 %v519
        %vm527 = vmor %vm525, %vm526
        %v528 = vsel %vm527, %v519, %v524
        %v529 = vmul.f32 %v505, %v518
        %v530 = vmul.f32 %v506, %v528
        %v532 = vperm.slane %v474, 0
        %v534 = vmul.f32 %v529, %v532
        %v535 = vmul.f32 %v530, %v532
        %v537 = vperm.slane %v475, 0
        %v539 = vadd.f32 %v534, %v537
        %v540 = vadd.f32 %v535, %v537
        %541 = vst [vmem:[%s197] sm:$0xff] %v539
        %542 = vst [vmem:[%s197 + $0x8] sm:$0xff] %v540
        %s543 = sand.u32 %s118, 1
        %s544 = scalar_lea.sflag [#allocation8], %s543
        %s545 = sand.u32 %s118, 1
        %s546 = smul.addr %s545, 16
        %s547 = scalar_lea.vmem [#allocation9], %s546
        // Predicated region
        $region101: #{tpu_custom_call.1} parent=31 // pred_check
          %p548 = pneg %p128
        $region102: #{tpu_custom_call.1} parent=31 // pred_check_branch
          %550 = sbr.rel (%p548) target = $region104
        $region103: #{tpu_custom_call.1} parent=31 // pred_region
          %s551 = sadd.s32 %s32, %s33
          %s552 = smul.u32 2, %s551
          %554 = vsyncadd %s544, 0
          %s555 = smul.addr %s552, 8
          %s556 = scalar_lea.hbm %s5, %s555
          %s557 = sshll.u32 %s547, 4
          %s558 = int_to_ptr.vmem [resolvable:$true] %s557
          %s559 = sshll.u32 %s556, 4
          %s560 = int_to_ptr.hbm [resolvable:$true] %s559
          %565 = dma.vmem_to_hbm [thread:$0]  %s558, 256, %s560, %s544, 128, 128, 8
        $region104: #{tpu_custom_call.1} parent=31 // pred_fallthru
          _
      $region32: #{tpu_custom_call.1} parent=5 // pred_fallthru
        _
      %p566 = scmp.le.s32.totalorder 2, %s23
      // Predicated region
      $region105: #{tpu_custom_call.1} parent=5 // pred_check
        %p567 = pneg %p566
      $region106: #{tpu_custom_call.1} parent=5 // pred_check_branch
        %569 = sbr.rel (%p567) target = $region108
      $region107: #{tpu_custom_call.1} parent=5 // pred_region
        %s570 = ssub.s32 %s23, 2
        // Predicated region
        $region109: #{tpu_custom_call.1} parent=107 // pred_check
          %p571 = pneg %p134
        $region110: #{tpu_custom_call.1} parent=107 // pred_check_branch
          %573 = sbr.rel (%p571) target = $region112
        $region111: #{tpu_custom_call.1} parent=107 // pred_region
          %s574 = sand.u32 %s119, 1
          %s575 = scalar_lea.sflag [#allocation8], %s574
          %s576 = sand.u32 %s119, 1
          %s577 = smul.addr %s576, 16
          %s578 = scalar_lea.vmem [#allocation9], %s577
          %580 = dma.done %s575, 256
        $region112: #{tpu_custom_call.1} parent=107 // pred_fallthru
          _
      $region108: #{tpu_custom_call.1} parent=5 // pred_fallthru
        _
    $region6: #{tpu_custom_call.1} parent=1 // loop_footer
      %s27 = sadd.s32 1, %s23
    $region7: #{tpu_custom_call.1} parent=1 // loop_footer_branch
      %22 = sbr.rel target = $region3
    $region8: #{tpu_custom_call.1} parent=1 // loop_exit
      _
    %581 = vsyncpa [#allocation7], 1
    %s582 = scalar_lea.sflag [#allocation7], 1
    %583 = vsyncpa %s582, 1
    %584 = vsyncpa [#allocation8], 1
    %s585 = scalar_lea.sflag [#allocation8], 1
    %586 = vsyncpa %s585, 1
  %587 = vsyncmov [#allocation3]
  %s588 = vpop.sfrf %587
  %p589 = scmp.eq.s32.totalorder %s588, 0
  %p590 = pneg %p589
  %592 = shalt.err (%p590)
  %s593 = scalar_lea.sflag [#allocation3], 1
  %594 = vsyncmov %s593
  %s595 = vpop.sfrf %594
  %p596 = scmp.eq.s32.totalorder %s595, 0
  %p597 = pneg %p596
  %599 = shalt.err (%p597)

</llo_original>
